<compile_context>
chip_gen: v7x
topology: tpu7x:2x2x1
jax: 0.10.0
libtpu: 0.0.40
codegen_flags: <defaults>
</compile_context>

<pallas_src>
import functools

import numpy as np
import jax
import jax.numpy as jnp
from jax.experimental import pallas as pl
from jax.experimental.pallas import tpu as pltpu


# ----------------------------- in-kernel helpers -----------------------------

def _lane_iota(L):
    return jax.lax.broadcasted_iota(jnp.int32, (1, L), 1)


def _im2col_to_scratch(a, patch_ref, Wo):
    """Write the 9 shifted 3x3-tap views of `a` (Cr, L = Ho*Wo, flat spatial)
    into patch_ref (9*Cr, L).

    Tap shifts are lane rotations (XLU) of the flat image; the conv's zero
    padding is realised purely through per-tap lane masks, so no padded copy
    of the activation is ever materialised.  Requires Wo to be a power of two
    (column index extracted with a bit-and).
    """
    Cr, L = a.shape
    lane = _lane_iota(L)
    col = jnp.bitwise_and(lane, Wo - 1)
    row_ok = (lane >= Wo, None, lane < L - Wo)    # source row in range
    col_ok = (col >= 1, None, col < Wo - 1)       # source col in range
    for dh in range(3):
        for dw in range(3):
            k = dh * 3 + dw
            s = (dh - 1) * Wo + (dw - 1)          # flat source offset
            v = a if s == 0 else pltpu.roll(a, shift=(-s) % L, axis=1)
            conds = [c for c in (row_ok[dh], col_ok[dw]) if c is not None]
            if conds:
                m = conds[0]
                for extra in conds[1:]:
                    m = m & extra
                v = jnp.where(m, v, 0.0)
            patch_ref[k * Cr:(k + 1) * Cr, :] = v


# ----------------------------- Pallas kernels -------------------------------

def upconv_conv1_stats_kernel(xu_ref, skip_ref, upw_ref, upb_ref, w1_ref, b1_ref,
                              z_ref, sum_ref, ssq_ref, cat_ref, patch_ref, *, Wo):
    """Fused ConvTranspose2d(k=2,s=2) + concat-free Conv3x3 + bias + BN1
    training statistics, all in channel-major (C, L = Ho*Wo) layout.

    xu_ref:   (1, Cin, L)  nearest-2x-replicated input image, flat spatial
    skip_ref: (1, C,  L)   skip connection, flat spatial
    upw_ref:  (4, C, Cin)  transposed-conv weight per output-pixel parity
    upb_ref:  (C, 1)
    w1_ref:   (C, 18*C)    conv1 weight, columns ordered (tap, [y ch | skip ch])
    b1_ref:   (C, 1)
    z_ref:    (1, C, L)    conv1 pre-BN output
    sum_ref/ssq_ref: (1, C, 1) per-image BN1 partial sums
    cat_ref:  VMEM (2C, L); patch_ref: VMEM (18C, L)
    """
    L = xu_ref.shape[-1]
    C = skip_ref.shape[1]

    # ConvTranspose2d(k=2, s=2): each output pixel uses exactly one 2x2 tap,
    # selected by its (row, col) parity -> 4 parity-masked matmuls over the
    # nearest-replicated input.  Spatial dim stays dense in lanes throughout.
    lane = _lane_iota(L)
    rbits = Wo.bit_length() - 1
    row_par = jnp.bitwise_and(jnp.right_shift(lane, rbits), 1)
    col_par = jnp.bitwise_and(lane, 1)
    xu = xu_ref[0]
    y = jnp.zeros((C, L), jnp.float32)
    for t in range(4):
        dr, ds = t // 2, t % 2
        m = (row_par == dr) & (col_par == ds)
        y = y + jnp.where(m, jnp.dot(upw_ref[t], xu,
                                     preferred_element_type=jnp.float32), 0.0)
    cat_ref[0:C, :] = y + upb_ref[...]
    cat_ref[C:2 * C, :] = skip_ref[0]

    # conv1 over cat([y, skip]) as one K = 9*2C contraction, N = L lanes.
    _im2col_to_scratch(cat_ref[...], patch_ref, Wo)
    acc = jnp.dot(w1_ref[...], patch_ref[...],
                  preferred_element_type=jnp.float32) + b1_ref[...]
    z_ref[0] = acc
    sum_ref[0] = jnp.sum(acc, axis=1, keepdims=True)
    ssq_ref[0] = jnp.sum(acc * acc, axis=1, keepdims=True)


def bn_relu_conv2_stats_kernel(z1_ref, sc_ref, sh_ref, w2_ref, b2_ref,
                               z_ref, sum_ref, ssq_ref, patch_ref, *, Wo):
    """Fused BN1-apply + ReLU + Conv3x3 + bias + BN2 training statistics.

    z1_ref: (1, C, L) conv1 pre-BN output; sc/sh: (C, 1) folded BN1 scale/shift
    w2_ref: (C, 9*C); b2_ref: (C, 1); z_ref: (1, C, L); sum/ssq: (1, C, 1)
    patch_ref: VMEM (9C, L)
    """
    a = jnp.maximum(z1_ref[0] * sc_ref[...] + sh_ref[...], 0.0)
    _im2col_to_scratch(a, patch_ref, Wo)
    acc = jnp.dot(w2_ref[...], patch_ref[...],
                  preferred_element_type=jnp.float32) + b2_ref[...]
    z_ref[0] = acc
    sum_ref[0] = jnp.sum(acc, axis=1, keepdims=True)
    ssq_ref[0] = jnp.sum(acc * acc, axis=1, keepdims=True)


def bn_relu_kernel(z_ref, sc_ref, sh_ref, o_ref):
    """Folded BatchNorm (training statistics) + ReLU: relu(z * scale + shift)."""
    o_ref[0] = jnp.maximum(z_ref[0] * sc_ref[...] + sh_ref[...], 0.0)


# ----------------------------- pallas_call wrappers --------------------------

def _conv1_fused(xu, skip, up_w, up_b, c1_w, c1_b, Wo):
    N, Cin, L = xu.shape
    C = skip.shape[1]
    # (Cin, Cout, 2, 2) -> (parity, Cout, Cin)
    upw = jnp.transpose(up_w, (2, 3, 1, 0)).reshape(4, C, Cin)
    upb = up_b.reshape(C, 1)
    # (Cout, 2C, 3, 3) -> (Cout, (tap, cat-channel)) matching the patch rows.
    w1 = jnp.transpose(c1_w, (0, 2, 3, 1)).reshape(C, 9 * 2 * C)
    b1 = c1_b.reshape(C, 1)
    kernel = functools.partial(upconv_conv1_stats_kernel, Wo=Wo)
    return pl.pallas_call(
        kernel,
        out_shape=(jax.ShapeDtypeStruct((N, C, L), jnp.float32),
                   jax.ShapeDtypeStruct((N, C, 1), jnp.float32),
                   jax.ShapeDtypeStruct((N, C, 1), jnp.float32)),
        grid_spec=pltpu.PrefetchScalarGridSpec(
            num_scalar_prefetch=0, grid=(N,),
            in_specs=[
                pl.BlockSpec((1, Cin, L), lambda n: (n, 0, 0)),
                pl.BlockSpec((1, C, L), lambda n: (n, 0, 0)),
                pl.BlockSpec((4, C, Cin), lambda n: (0, 0, 0)),
                pl.BlockSpec((C, 1), lambda n: (0, 0)),
                pl.BlockSpec((C, 9 * 2 * C), lambda n: (0, 0)),
                pl.BlockSpec((C, 1), lambda n: (0, 0)),
            ],
            out_specs=[
                pl.BlockSpec((1, C, L), lambda n: (n, 0, 0)),
                pl.BlockSpec((1, C, 1), lambda n: (n, 0, 0)),
                pl.BlockSpec((1, C, 1), lambda n: (n, 0, 0)),
            ],
            scratch_shapes=[pltpu.VMEM((2 * C, L), jnp.float32),
                            pltpu.VMEM((18 * C, L), jnp.float32)]),
        compiler_params=pltpu.CompilerParams(dimension_semantics=("parallel",)),
    )(xu, skip, upw, upb, w1, b1)


def _conv2_fused(z1, scale1, shift1, c2_w, c2_b, Wo):
    N, C, L = z1.shape
    w2 = jnp.transpose(c2_w, (0, 2, 3, 1)).reshape(C, 9 * C)
    b2 = c2_b.reshape(C, 1)
    kernel = functools.partial(bn_relu_conv2_stats_kernel, Wo=Wo)
    return pl.pallas_call(
        kernel,
        out_shape=(jax.ShapeDtypeStruct((N, C, L), jnp.float32),
                   jax.ShapeDtypeStruct((N, C, 1), jnp.float32),
                   jax.ShapeDtypeStruct((N, C, 1), jnp.float32)),
        grid_spec=pltpu.PrefetchScalarGridSpec(
            num_scalar_prefetch=0, grid=(N,),
            in_specs=[
                pl.BlockSpec((1, C, L), lambda n: (n, 0, 0)),
                pl.BlockSpec((C, 1), lambda n: (0, 0)),
                pl.BlockSpec((C, 1), lambda n: (0, 0)),
                pl.BlockSpec((C, 9 * C), lambda n: (0, 0)),
                pl.BlockSpec((C, 1), lambda n: (0, 0)),
            ],
            out_specs=[
                pl.BlockSpec((1, C, L), lambda n: (n, 0, 0)),
                pl.BlockSpec((1, C, 1), lambda n: (n, 0, 0)),
                pl.BlockSpec((1, C, 1), lambda n: (n, 0, 0)),
            ],
            scratch_shapes=[pltpu.VMEM((9 * C, L), jnp.float32)]),
        compiler_params=pltpu.CompilerParams(dimension_semantics=("parallel",)),
    )(z1, scale1, shift1, w2, b2)


def _bn_relu(z, scale, shift):
    N, C, L = z.shape
    return pl.pallas_call(
        bn_relu_kernel,
        out_shape=jax.ShapeDtypeStruct((N, C, L), jnp.float32),
        grid_spec=pltpu.PrefetchScalarGridSpec(
            num_scalar_prefetch=0, grid=(N,),
            in_specs=[
                pl.BlockSpec((1, C, L), lambda n: (n, 0, 0)),
                pl.BlockSpec((C, 1), lambda n: (0, 0)),
                pl.BlockSpec((C, 1), lambda n: (0, 0)),
            ],
            out_specs=pl.BlockSpec((1, C, L), lambda n: (n, 0, 0))),
        compiler_params=pltpu.CompilerParams(dimension_semantics=("parallel",)),
    )(z, scale, shift)


def _bn_fold(psum, pssq, gamma, beta, count, eps):
    s = jnp.sum(psum, axis=0)[:, 0]
    ss = jnp.sum(pssq, axis=0)[:, 0]
    mean = s / count
    # TODO(synk): E[x^2]-E[x]^2 can cancel for large activation means; use a
    # shifted / two-pass formulation at production scale.
    var = jnp.maximum(ss / count - mean * mean, 0.0)   # biased var (BN training)
    scale = gamma * jax.lax.rsqrt(var + eps)
    shift = beta - mean * scale
    return scale.reshape(-1, 1), shift.reshape(-1, 1)


# ----------------------------- forward ---------------------------------------

def decoder_block_forward(x_nchw, skip_nchw, p, eps=1e-5):
    N, Cin, Hin, Win = x_nchw.shape
    C = p['up_w'].shape[1]
    Ho, Wo = 2 * Hin, 2 * Win
    # TODO(synk): F.interpolate(mode='bilinear', align_corners=True) fallback
    # branch not implemented; k2s2 upsampling already matches the skip size.
    assert skip_nchw.shape == (N, C, Ho, Wo)
    assert Wo & (Wo - 1) == 0, "flat-image lane masks assume power-of-two width"
    L = Ho * Wo

    # 2x2 nearest replication of x (pure data movement, tiny); the transposed
    # conv arithmetic itself runs inside the conv1 kernel as parity matmuls.
    xu = jnp.repeat(jnp.repeat(x_nchw, 2, axis=2), 2, axis=3).reshape(N, Cin, L)
    skip = skip_nchw.reshape(N, C, L)      # NCHW is already channel-major: free

    z1, ps1, pq1 = _conv1_fused(xu, skip, p['up_w'], p['up_b'],
                                p['c1_w'], p['c1_b'], Wo)
    sc1, sh1 = _bn_fold(ps1, pq1, p['g1'], p['be1'], N * L, eps)

    z2, ps2, pq2 = _conv2_fused(z1, sc1, sh1, p['c2_w'], p['c2_b'], Wo)
    sc2, sh2 = _bn_fold(ps2, pq2, p['g2'], p['be2'], N * L, eps)

    out = _bn_relu(z2, sc2, sh2)           # (N, C, L), channel-major
    return out.reshape(N, C, Ho, Wo)       # free reshape: already NCHW


# ----------------------------- pure-JAX reference ----------------------------

def reference_forward(x_nchw, skip_nchw, p, eps=1e-5):
    dn = ('NHWC', 'HWIO', 'NHWC')
    x = jnp.transpose(x_nchw, (0, 2, 3, 1))
    skip = jnp.transpose(skip_nchw, (0, 2, 3, 1))
    w = jnp.transpose(p['up_w'][:, :, ::-1, ::-1], (2, 3, 0, 1))
    y = jax.lax.conv_general_dilated(x, w, (1, 1), ((1, 1), (1, 1)),
                                     lhs_dilation=(2, 2), dimension_numbers=dn) + p['up_b']
    xcat = jnp.concatenate([y, skip], axis=-1)

    def cbr(z, wpt, b, g, be):
        wh = jnp.transpose(wpt, (2, 3, 1, 0))
        c = jax.lax.conv_general_dilated(z, wh, (1, 1), ((1, 1), (1, 1)),
                                         dimension_numbers=dn) + b
        m = jnp.mean(c, axis=(0, 1, 2))
        v = jnp.var(c, axis=(0, 1, 2))
        return jnp.maximum((c - m) * jax.lax.rsqrt(v + eps) * g + be, 0.0)

    h = cbr(xcat, p['c1_w'], p['c1_b'], p['g1'], p['be1'])
    h = cbr(h, p['c2_w'], p['c2_b'], p['g2'], p['be2'])
    return jnp.transpose(h, (0, 3, 1, 2))


# ----------------------------- params & main ---------------------------------

def init_params(key, in_channels, out_channels):
    ks = jax.random.split(key, 10)
    u = lambda k, s, a: jax.random.uniform(k, s, jnp.float32, -a, a)
    return {
        'up_w': u(ks[0], (in_channels, out_channels, 2, 2), 0.3),
        'up_b': u(ks[1], (out_channels,), 0.3),
        'c1_w': u(ks[2], (out_channels, 2 * out_channels, 3, 3), 0.2),
        'c1_b': u(ks[3], (out_channels,), 0.2),
        'g1':   1.0 + u(ks[4], (out_channels,), 0.2),
        'be1':  u(ks[5], (out_channels,), 0.2),
        'c2_w': u(ks[6], (out_channels, out_channels, 3, 3), 0.2),
        'c2_b': u(ks[7], (out_channels,), 0.2),
        'g2':   1.0 + u(ks[8], (out_channels,), 0.2),
        'be2':  u(ks[9], (out_channels,), 0.2),
    }


if __name__ == "__main__":
    key = jax.random.PRNGKey(0)
    kx, ks, kp = jax.random.split(key, 3)
    in_channels, out_channels = 8, 4
    N, H, W = 2, 8, 8

    x = jax.random.normal(kx, (N, in_channels, H, W), jnp.float32)           # NCHW
    skip = jax.random.normal(ks, (N, out_channels, 2 * H, 2 * W), jnp.float32)
    params = init_params(kp, in_channels, out_channels)

    fwd = jax.jit(decoder_block_forward)
    out = jax.block_until_ready(fwd(x, skip, params))

    ref = reference_forward(x, skip, params)
    np.testing.assert_allclose(np.asarray(out), np.asarray(ref), rtol=2e-3, atol=2e-3)
    assert out.shape == (N, out_channels, 2 * H, 2 * W)
    print("KERNEL_OK")
</pallas_src>

<mosaic_0001>
module attributes {stable_mosaic.version = 11 : i64} {
  func.func @bn_relu_conv2_stats_kernel(%arg0: i32, %arg1: memref<1x4x256xf32, #tpu.memory_space<vmem>>, %arg2: memref<4x1xf32, #tpu.memory_space<vmem>>, %arg3: memref<4x1xf32, #tpu.memory_space<vmem>>, %arg4: memref<4x36xf32, #tpu.memory_space<vmem>>, %arg5: memref<4x1xf32, #tpu.memory_space<vmem>>, %arg6: memref<1x4x256xf32, #tpu.memory_space<vmem>>, %arg7: memref<1x4x1xf32, #tpu.memory_space<vmem>>, %arg8: memref<1x4x1xf32, #tpu.memory_space<vmem>>, %arg9: memref<36x256xf32, #tpu.memory_space<vmem>>) attributes {dimension_semantics = [#tpu.dimension_semantics<parallel>], iteration_bounds = array<i64: 2>, scalar_prefetch = 0 : i64, scratch_operands = 1 : i64, tpu.core_type = #tpu.core_type<tc>, window_params = [{transform_indices = @transform_0, window_bounds = array<i64: 1, 4, 256>}, {pipeline_mode = #tpu.pipeline_mode<synchronous>, transform_indices = @transform_1, window_bounds = array<i64: 4, 1>}, {pipeline_mode = #tpu.pipeline_mode<synchronous>, transform_indices = @transform_2, window_bounds = array<i64: 4, 1>}, {pipeline_mode = #tpu.pipeline_mode<synchronous>, transform_indices = @transform_3, window_bounds = array<i64: 4, 36>}, {pipeline_mode = #tpu.pipeline_mode<synchronous>, transform_indices = @transform_4, window_bounds = array<i64: 4, 1>}, {transform_indices = @transform_5, window_bounds = array<i64: 1, 4, 256>}, {transform_indices = @transform_6, window_bounds = array<i64: 1, 4, 1>}, {transform_indices = @transform_7, window_bounds = array<i64: 1, 4, 1>}]} {
    %c0 = arith.constant 0 : index
    %c0_0 = arith.constant 0 : index
    %c0_1 = arith.constant 0 : index
    %0 = vector.load %arg1[%c0, %c0_0, %c0_1] : memref<1x4x256xf32, #tpu.memory_space<vmem>>, vector<1x4x256xf32>
    %1 = vector.shape_cast %0 : vector<1x4x256xf32> to vector<4x256xf32>
    %c0_2 = arith.constant 0 : index
    %c0_3 = arith.constant 0 : index
    %2 = vector.load %arg2[%c0_2, %c0_3] : memref<4x1xf32, #tpu.memory_space<vmem>>, vector<4x1xf32>
    %3 = vector.broadcast %2 : vector<4x1xf32> to vector<4x256xf32>
    %4 = arith.mulf %1, %3 : vector<4x256xf32>
    %c0_4 = arith.constant 0 : index
    %c0_5 = arith.constant 0 : index
    %5 = vector.load %arg3[%c0_4, %c0_5] : memref<4x1xf32, #tpu.memory_space<vmem>>, vector<4x1xf32>
    %6 = vector.broadcast %5 : vector<4x1xf32> to vector<4x256xf32>
    %7 = arith.addf %4, %6 : vector<4x256xf32>
    %cst = arith.constant 0.000000e+00 : f32
    %8 = vector.broadcast %cst : f32 to vector<4x256xf32>
    %9 = arith.maximumf %7, %8 : vector<4x256xf32>
    %10 = tpu.iota {dimensions = array<i32: 1>} : vector<1x256xi32>
    %c15_i32 = arith.constant 15 : i32
    %11 = vector.broadcast %c15_i32 : i32 to vector<1x256xi32>
    %12 = arith.andi %10, %11 : vector<1x256xi32>
    %c16_i32 = arith.constant 16 : i32
    %13 = vector.broadcast %c16_i32 : i32 to vector<1x256xi32>
    %14 = arith.cmpi sge, %10, %13 : vector<1x256xi32>
    %c240_i32 = arith.constant 240 : i32
    %15 = vector.broadcast %c240_i32 : i32 to vector<1x256xi32>
    %16 = arith.cmpi slt, %10, %15 : vector<1x256xi32>
    %c1_i32 = arith.constant 1 : i32
    %17 = vector.broadcast %c1_i32 : i32 to vector<1x256xi32>
    %18 = arith.cmpi sge, %12, %17 : vector<1x256xi32>
    %c15_i32_6 = arith.constant 15 : i32
    %19 = vector.broadcast %c15_i32_6 : i32 to vector<1x256xi32>
    %20 = arith.cmpi slt, %12, %19 : vector<1x256xi32>
    %c17_i32 = arith.constant 17 : i32
    %21 = tpu.dynamic_rotate %9 by %c17_i32 dim 1 : vector<4x256xf32>, i32 -> vector<4x256xf32>
    %22 = arith.andi %14, %18 : vector<1x256xi1>
    %cst_7 = arith.constant 0.000000e+00 : f32
    %23 = vector.shape_cast %22 : vector<1x256xi1> to vector<1x256xi1>
    %24 = vector.broadcast %23 : vector<1x256xi1> to vector<4x256xi1>
    %25 = vector.broadcast %cst_7 : f32 to vector<4x256xf32>
    %26 = arith.select %24, %21, %25 : vector<4x256xi1>, vector<4x256xf32>
    %c0_8 = arith.constant 0 : index
    %c0_9 = arith.constant 0 : index
    %27 = vector.load %arg9[%c0_8, %c0_9] : memref<36x256xf32, #tpu.memory_space<vmem>>, vector<4x256xf32>
    tpu.vector_store %arg9[%c0_8, %c0_9], %26 {strides = array<i32>} : memref<36x256xf32, #tpu.memory_space<vmem>>, vector<4x256xf32>,
    %c16_i32_10 = arith.constant 16 : i32
    %28 = tpu.dynamic_rotate %9 by %c16_i32_10 dim 1 : vector<4x256xf32>, i32 -> vector<4x256xf32>
    %cst_11 = arith.constant 0.000000e+00 : f32
    %29 = vector.shape_cast %14 : vector<1x256xi1> to vector<1x256xi1>
    %30 = vector.broadcast %29 : vector<1x256xi1> to vector<4x256xi1>
    %31 = vector.broadcast %cst_11 : f32 to vector<4x256xf32>
    %32 = arith.select %30, %28, %31 : vector<4x256xi1>, vector<4x256xf32>
    %c4 = arith.constant 4 : index
    %c0_12 = arith.constant 0 : index
    %33 = vector.load %arg9[%c4, %c0_12] : memref<36x256xf32, #tpu.memory_space<vmem>>, vector<4x256xf32>
    tpu.vector_store %arg9[%c4, %c0_12], %32 {strides = array<i32>} : memref<36x256xf32, #tpu.memory_space<vmem>>, vector<4x256xf32>,
    %c15_i32_13 = arith.constant 15 : i32
    %34 = tpu.dynamic_rotate %9 by %c15_i32_13 dim 1 : vector<4x256xf32>, i32 -> vector<4x256xf32>
    %35 = arith.andi %14, %20 : vector<1x256xi1>
    %cst_14 = arith.constant 0.000000e+00 : f32
    %36 = vector.shape_cast %35 : vector<1x256xi1> to vector<1x256xi1>
    %37 = vector.broadcast %36 : vector<1x256xi1> to vector<4x256xi1>
    %38 = vector.broadcast %cst_14 : f32 to vector<4x256xf32>
    %39 = arith.select %37, %34, %38 : vector<4x256xi1>, vector<4x256xf32>
    %c8 = arith.constant 8 : index
    %c0_15 = arith.constant 0 : index
    %40 = vector.load %arg9[%c8, %c0_15] : memref<36x256xf32, #tpu.memory_space<vmem>>, vector<4x256xf32>
    tpu.vector_store %arg9[%c8, %c0_15], %39 {strides = array<i32>} : memref<36x256xf32, #tpu.memory_space<vmem>>, vector<4x256xf32>,
    %c1_i32_16 = arith.constant 1 : i32
    %41 = tpu.dynamic_rotate %9 by %c1_i32_16 dim 1 : vector<4x256xf32>, i32 -> vector<4x256xf32>
    %cst_17 = arith.constant 0.000000e+00 : f32
    %42 = vector.shape_cast %18 : vector<1x256xi1> to vector<1x256xi1>
    %43 = vector.broadcast %42 : vector<1x256xi1> to vector<4x256xi1>
    %44 = vector.broadcast %cst_17 : f32 to vector<4x256xf32>
    %45 = arith.select %43, %41, %44 : vector<4x256xi1>, vector<4x256xf32>
    %c12 = arith.constant 12 : index
    %c0_18 = arith.constant 0 : index
    %46 = vector.load %arg9[%c12, %c0_18] : memref<36x256xf32, #tpu.memory_space<vmem>>, vector<4x256xf32>
    tpu.vector_store %arg9[%c12, %c0_18], %45 {strides = array<i32>} : memref<36x256xf32, #tpu.memory_space<vmem>>, vector<4x256xf32>,
    %c16 = arith.constant 16 : index
    %c0_19 = arith.constant 0 : index
    %47 = vector.load %arg9[%c16, %c0_19] : memref<36x256xf32, #tpu.memory_space<vmem>>, vector<4x256xf32>
    tpu.vector_store %arg9[%c16, %c0_19], %9 {strides = array<i32>} : memref<36x256xf32, #tpu.memory_space<vmem>>, vector<4x256xf32>,
    %c255_i32 = arith.constant 255 : i32
    %48 = tpu.dynamic_rotate %9 by %c255_i32 dim 1 : vector<4x256xf32>, i32 -> vector<4x256xf32>
    %cst_20 = arith.constant 0.000000e+00 : f32
    %49 = vector.shape_cast %20 : vector<1x256xi1> to vector<1x256xi1>
    %50 = vector.broadcast %49 : vector<1x256xi1> to vector<4x256xi1>
    %51 = vector.broadcast %cst_20 : f32 to vector<4x256xf32>
    %52 = arith.select %50, %48, %51 : vector<4x256xi1>, vector<4x256xf32>
    %c20 = arith.constant 20 : index
    %c0_21 = arith.constant 0 : index
    %53 = vector.load %arg9[%c20, %c0_21] : memref<36x256xf32, #tpu.memory_space<vmem>>, vector<4x256xf32>
    tpu.vector_store %arg9[%c20, %c0_21], %52 {strides = array<i32>} : memref<36x256xf32, #tpu.memory_space<vmem>>, vector<4x256xf32>,
    %c241_i32 = arith.constant 241 : i32
    %54 = tpu.dynamic_rotate %9 by %c241_i32 dim 1 : vector<4x256xf32>, i32 -> vector<4x256xf32>
    %55 = arith.andi %16, %18 : vector<1x256xi1>
    %cst_22 = arith.constant 0.000000e+00 : f32
    %56 = vector.shape_cast %55 : vector<1x256xi1> to vector<1x256xi1>
    %57 = vector.broadcast %56 : vector<1x256xi1> to vector<4x256xi1>
    %58 = vector.broadcast %cst_22 : f32 to vector<4x256xf32>
    %59 = arith.select %57, %54, %58 : vector<4x256xi1>, vector<4x256xf32>
    %c24 = arith.constant 24 : index
    %c0_23 = arith.constant 0 : index
    %60 = vector.load %arg9[%c24, %c0_23] : memref<36x256xf32, #tpu.memory_space<vmem>>, vector<4x256xf32>
    tpu.vector_store %arg9[%c24, %c0_23], %59 {strides = array<i32>} : memref<36x256xf32, #tpu.memory_space<vmem>>, vector<4x256xf32>,
    %c240_i32_24 = arith.constant 240 : i32
    %61 = tpu.dynamic_rotate %9 by %c240_i32_24 dim 1 : vector<4x256xf32>, i32 -> vector<4x256xf32>
    %cst_25 = arith.constant 0.000000e+00 : f32
    %62 = vector.shape_cast %16 : vector<1x256xi1> to vector<1x256xi1>
    %63 = vector.broadcast %62 : vector<1x256xi1> to vector<4x256xi1>
    %64 = vector.broadcast %cst_25 : f32 to vector<4x256xf32>
    %65 = arith.select %63, %61, %64 : vector<4x256xi1>, vector<4x256xf32>
    %c28 = arith.constant 28 : index
    %c0_26 = arith.constant 0 : index
    %66 = vector.load %arg9[%c28, %c0_26] : memref<36x256xf32, #tpu.memory_space<vmem>>, vector<4x256xf32>
    tpu.vector_store %arg9[%c28, %c0_26], %65 {strides = array<i32>} : memref<36x256xf32, #tpu.memory_space<vmem>>, vector<4x256xf32>,
    %c239_i32 = arith.constant 239 : i32
    %67 = tpu.dynamic_rotate %9 by %c239_i32 dim 1 : vector<4x256xf32>, i32 -> vector<4x256xf32>
    %68 = arith.andi %16, %20 : vector<1x256xi1>
    %cst_27 = arith.constant 0.000000e+00 : f32
    %69 = vector.shape_cast %68 : vector<1x256xi1> to vector<1x256xi1>
    %70 = vector.broadcast %69 : vector<1x256xi1> to vector<4x256xi1>
    %71 = vector.broadcast %cst_27 : f32 to vector<4x256xf32>
    %72 = arith.select %70, %67, %71 : vector<4x256xi1>, vector<4x256xf32>
    %c32 = arith.constant 32 : index
    %c0_28 = arith.constant 0 : index
    %73 = vector.load %arg9[%c32, %c0_28] : memref<36x256xf32, #tpu.memory_space<vmem>>, vector<4x256xf32>
    tpu.vector_store %arg9[%c32, %c0_28], %72 {strides = array<i32>} : memref<36x256xf32, #tpu.memory_space<vmem>>, vector<4x256xf32>,
    %c0_29 = arith.constant 0 : index
    %c0_30 = arith.constant 0 : index
    %74 = vector.load %arg4[%c0_29, %c0_30] : memref<4x36xf32, #tpu.memory_space<vmem>>, vector<4x36xf32>
    %c0_31 = arith.constant 0 : index
    %c0_32 = arith.constant 0 : index
    %75 = vector.load %arg9[%c0_31, %c0_32] : memref<36x256xf32, #tpu.memory_space<vmem>>, vector<36x256xf32>
    %cst_33 = arith.constant dense<0.000000e+00> : vector<4x256xf32>
    %76 = tpu.matmul %74, %75, %cst_33 {dimension_numbers = #tpu.dot_dimension_numbers<[1], [0], [0], [1], [0, 0, 1, 1], [], []>} : vector<4x36xf32>, vector<36x256xf32>, vector<4x256xf32> -> vector<4x256xf32>
    %c0_34 = arith.constant 0 : index
    %c0_35 = arith.constant 0 : index
    %77 = vector.load %arg5[%c0_34, %c0_35] : memref<4x1xf32, #tpu.memory_space<vmem>>, vector<4x1xf32>
    %78 = vector.broadcast %77 : vector<4x1xf32> to vector<4x256xf32>
    %79 = arith.addf %76, %78 : vector<4x256xf32>
    %c0_36 = arith.constant 0 : index
    %c0_37 = arith.constant 0 : index
    %c0_38 = arith.constant 0 : index
    %80 = vector.load %arg6[%c0_36, %c0_37, %c0_38] : memref<1x4x256xf32, #tpu.memory_space<vmem>>, vector<1x4x256xf32>
    %81 = vector.shape_cast %80 : vector<1x4x256xf32> to vector<4x256xf32>
    %82 = vector.shape_cast %79 : vector<4x256xf32> to vector<1x4x256xf32>
    tpu.vector_store %arg6[%c0_36, %c0_37, %c0_38], %82 {strides = array<i32>} : memref<1x4x256xf32, #tpu.memory_space<vmem>>, vector<1x4x256xf32>,
    %cst_39 = arith.constant dense<0.000000e+00> : vector<4xf32>
    %83 = vector.multi_reduction <add>, %79, %cst_39 [1] : vector<4x256xf32> to vector<4xf32>
    %84 = vector.shape_cast %83 : vector<4xf32> to vector<4x1xf32>
    %c0_40 = arith.constant 0 : index
    %c0_41 = arith.constant 0 : index
    %c0_42 = arith.constant 0 : index
    %85 = vector.load %arg7[%c0_40, %c0_41, %c0_42] : memref<1x4x1xf32, #tpu.memory_space<vmem>>, vector<1x4x1xf32>
    %86 = vector.shape_cast %85 : vector<1x4x1xf32> to vector<4x1xf32>
    %87 = vector.shape_cast %84 : vector<4x1xf32> to vector<1x4x1xf32>
    tpu.vector_store %arg7[%c0_40, %c0_41, %c0_42], %87 {strides = array<i32>} : memref<1x4x1xf32, #tpu.memory_space<vmem>>, vector<1x4x1xf32>,
    %88 = arith.mulf %79, %79 : vector<4x256xf32>
    %cst_43 = arith.constant dense<0.000000e+00> : vector<4xf32>
    %89 = vector.multi_reduction <add>, %88, %cst_43 [1] : vector<4x256xf32> to vector<4xf32>
    %90 = vector.shape_cast %89 : vector<4xf32> to vector<4x1xf32>
    %c0_44 = arith.constant 0 : index
    %c0_45 = arith.constant 0 : index
    %c0_46 = arith.constant 0 : index
    %91 = vector.load %arg8[%c0_44, %c0_45, %c0_46] : memref<1x4x1xf32, #tpu.memory_space<vmem>>, vector<1x4x1xf32>
    %92 = vector.shape_cast %91 : vector<1x4x1xf32> to vector<4x1xf32>
    %93 = vector.shape_cast %90 : vector<4x1xf32> to vector<1x4x1xf32>
    tpu.vector_store %arg8[%c0_44, %c0_45, %c0_46], %93 {strides = array<i32>} : memref<1x4x1xf32, #tpu.memory_space<vmem>>, vector<1x4x1xf32>,
    return
  }
  func.func @transform_0(%arg0: i32) -> (i32, i32, i32) {
    %c0_i32 = arith.constant 0 : i32
    %c0_i32_0 = arith.constant 0 : i32
    %c0_i32_1 = arith.constant 0 : i32
    return %arg0, %c0_i32, %c0_i32_0 : i32, i32, i32
  }
  func.func @transform_1(%arg0: i32) -> (i32, i32) {
    %c0_i32 = arith.constant 0 : i32
    %c0_i32_0 = arith.constant 0 : i32
    %c0_i32_1 = arith.constant 0 : i32
    return %c0_i32, %c0_i32_0 : i32, i32
  }
  func.func @transform_2(%arg0: i32) -> (i32, i32) {
    %c0_i32 = arith.constant 0 : i32
    %c0_i32_0 = arith.constant 0 : i32
    %c0_i32_1 = arith.constant 0 : i32
    return %c0_i32, %c0_i32_0 : i32, i32
  }
  func.func @transform_3(%arg0: i32) -> (i32, i32) {
    %c0_i32 = arith.constant 0 : i32
    %c0_i32_0 = arith.constant 0 : i32
    %c0_i32_1 = arith.constant 0 : i32
    return %c0_i32, %c0_i32_0 : i32, i32
  }
  func.func @transform_4(%arg0: i32) -> (i32, i32) {
    %c0_i32 = arith.constant 0 : i32
    %c0_i32_0 = arith.constant 0 : i32
    %c0_i32_1 = arith.constant 0 : i32
    return %c0_i32, %c0_i32_0 : i32, i32
  }
  func.func @transform_5(%arg0: i32) -> (i32, i32, i32) {
    %c0_i32 = arith.constant 0 : i32
    %c0_i32_0 = arith.constant 0 : i32
    %c0_i32_1 = arith.constant 0 : i32
    return %arg0, %c0_i32, %c0_i32_0 : i32, i32, i32
  }
  func.func @transform_6(%arg0: i32) -> (i32, i32, i32) {
    %c0_i32 = arith.constant 0 : i32
    %c0_i32_0 = arith.constant 0 : i32
    %c0_i32_1 = arith.constant 0 : i32
    return %arg0, %c0_i32, %c0_i32_0 : i32, i32, i32
  }
  func.func @transform_7(%arg0: i32) -> (i32, i32, i32) {
    %c0_i32 = arith.constant 0 : i32
    %c0_i32_0 = arith.constant 0 : i32
    %c0_i32_1 = arith.constant 0 : i32
    return %arg0, %c0_i32, %c0_i32_0 : i32, i32, i32
  }
}

module attributes {stable_mosaic.version = 11 : i64} {
  func.func @upconv_conv1_stats_kernel(%arg0: i32, %arg1: memref<1x8x256xf32, #tpu.memory_space<vmem>>, %arg2: memref<1x4x256xf32, #tpu.memory_space<vmem>>, %arg3: memref<4x4x8xf32, #tpu.memory_space<vmem>>, %arg4: memref<4x1xf32, #tpu.memory_space<vmem>>, %arg5: memref<4x72xf32, #tpu.memory_space<vmem>>, %arg6: memref<4x1xf32, #tpu.memory_space<vmem>>, %arg7: memref<1x4x256xf32, #tpu.memory_space<vmem>>, %arg8: memref<1x4x1xf32, #tpu.memory_space<vmem>>, %arg9: memref<1x4x1xf32, #tpu.memory_space<vmem>>, %arg10: memref<8x256xf32, #tpu.memory_space<vmem>>, %arg11: memref<72x256xf32, #tpu.memory_space<vmem>>) attributes {dimension_semantics = [#tpu.dimension_semantics<parallel>], iteration_bounds = array<i64: 2>, scalar_prefetch = 0 : i64, scratch_operands = 2 : i64, tpu.core_type = #tpu.core_type<tc>, window_params = [{transform_indices = @transform_0, window_bounds = array<i64: 1, 8, 256>}, {transform_indices = @transform_1, window_bounds = array<i64: 1, 4, 256>}, {pipeline_mode = #tpu.pipeline_mode<synchronous>, transform_indices = @transform_2, window_bounds = array<i64: 4, 4, 8>}, {pipeline_mode = #tpu.pipeline_mode<synchronous>, transform_indices = @transform_3, window_bounds = array<i64: 4, 1>}, {pipeline_mode = #tpu.pipeline_mode<synchronous>, transform_indices = @transform_4, window_bounds = array<i64: 4, 72>}, {pipeline_mode = #tpu.pipeline_mode<synchronous>, transform_indices = @transform_5, window_bounds = array<i64: 4, 1>}, {transform_indices = @transform_6, window_bounds = array<i64: 1, 4, 256>}, {transform_indices = @transform_7, window_bounds = array<i64: 1, 4, 1>}, {transform_indices = @transform_8, window_bounds = array<i64: 1, 4, 1>}]} {
    %0 = tpu.iota {dimensions = array<i32: 1>} : vector<1x256xi32>
    %c4_i32 = arith.constant 4 : i32
    %1 = vector.broadcast %c4_i32 : i32 to vector<1x256xi32>
    %2 = arith.shrsi %0, %1 : vector<1x256xi32>
    %c1_i32 = arith.constant 1 : i32
    %3 = vector.broadcast %c1_i32 : i32 to vector<1x256xi32>
    %4 = arith.andi %2, %3 : vector<1x256xi32>
    %c1_i32_0 = arith.constant 1 : i32
    %5 = vector.broadcast %c1_i32_0 : i32 to vector<1x256xi32>
    %6 = arith.andi %0, %5 : vector<1x256xi32>
    %c0 = arith.constant 0 : index
    %c0_1 = arith.constant 0 : index
    %c0_2 = arith.constant 0 : index
    %7 = vector.load %arg1[%c0, %c0_1, %c0_2] : memref<1x8x256xf32, #tpu.memory_space<vmem>>, vector<1x8x256xf32>
    %8 = vector.shape_cast %7 : vector<1x8x256xf32> to vector<8x256xf32>
    %cst = arith.constant 0.000000e+00 : f32
    %9 = vector.broadcast %cst : f32 to vector<4x256xf32>
    %c0_i32 = arith.constant 0 : i32
    %10 = vector.broadcast %c0_i32 : i32 to vector<1x256xi32>
    %11 = arith.cmpi eq, %4, %10 : vector<1x256xi32>
    %c0_i32_3 = arith.constant 0 : i32
    %12 = vector.broadcast %c0_i32_3 : i32 to vector<1x256xi32>
    %13 = arith.cmpi eq, %6, %12 : vector<1x256xi32>
    %14 = arith.andi %11, %13 : vector<1x256xi1>
    %c0_4 = arith.constant 0 : index
    %c0_5 = arith.constant 0 : index
    %c0_6 = arith.constant 0 : index
    %15 = vector.load %arg3[%c0_4, %c0_5, %c0_6] : memref<4x4x8xf32, #tpu.memory_space<vmem>>, vector<1x4x8xf32>
    %16 = vector.shape_cast %15 : vector<1x4x8xf32> to vector<4x8xf32>
    %cst_7 = arith.constant dense<0.000000e+00> : vector<4x256xf32>
    %17 = tpu.matmul %16, %8, %cst_7 {dimension_numbers = #tpu.dot_dimension_numbers<[1], [0], [0], [1], [0, 0, 1, 1], [], []>} : vector<4x8xf32>, vector<8x256xf32>, vector<4x256xf32> -> vector<4x256xf32>
    %cst_8 = arith.constant 0.000000e+00 : f32
    %18 = vector.shape_cast %14 : vector<1x256xi1> to vector<1x256xi1>
    %19 = vector.broadcast %18 : vector<1x256xi1> to vector<4x256xi1>
    %20 = vector.broadcast %cst_8 : f32 to vector<4x256xf32>
    %21 = arith.select %19, %17, %20 : vector<4x256xi1>, vector<4x256xf32>
    %22 = arith.addf %9, %21 : vector<4x256xf32>
    %c0_i32_9 = arith.constant 0 : i32
    %23 = vector.broadcast %c0_i32_9 : i32 to vector<1x256xi32>
    %24 = arith.cmpi eq, %4, %23 : vector<1x256xi32>
    %c1_i32_10 = arith.constant 1 : i32
    %25 = vector.broadcast %c1_i32_10 : i32 to vector<1x256xi32>
    %26 = arith.cmpi eq, %6, %25 : vector<1x256xi32>
    %27 = arith.andi %24, %26 : vector<1x256xi1>
    %c1 = arith.constant 1 : index
    %c0_11 = arith.constant 0 : index
    %c0_12 = arith.constant 0 : index
    %28 = vector.load %arg3[%c1, %c0_11, %c0_12] : memref<4x4x8xf32, #tpu.memory_space<vmem>>, vector<1x4x8xf32>
    %29 = vector.shape_cast %28 : vector<1x4x8xf32> to vector<4x8xf32>
    %cst_13 = arith.constant dense<0.000000e+00> : vector<4x256xf32>
    %30 = tpu.matmul %29, %8, %cst_13 {dimension_numbers = #tpu.dot_dimension_numbers<[1], [0], [0], [1], [0, 0, 1, 1], [], []>} : vector<4x8xf32>, vector<8x256xf32>, vector<4x256xf32> -> vector<4x256xf32>
    %cst_14 = arith.constant 0.000000e+00 : f32
    %31 = vector.shape_cast %27 : vector<1x256xi1> to vector<1x256xi1>
    %32 = vector.broadcast %31 : vector<1x256xi1> to vector<4x256xi1>
    %33 = vector.broadcast %cst_14 : f32 to vector<4x256xf32>
    %34 = arith.select %32, %30, %33 : vector<4x256xi1>, vector<4x256xf32>
    %35 = arith.addf %22, %34 : vector<4x256xf32>
    %c1_i32_15 = arith.constant 1 : i32
    %36 = vector.broadcast %c1_i32_15 : i32 to vector<1x256xi32>
    %37 = arith.cmpi eq, %4, %36 : vector<1x256xi32>
    %c0_i32_16 = arith.constant 0 : i32
    %38 = vector.broadcast %c0_i32_16 : i32 to vector<1x256xi32>
    %39 = arith.cmpi eq, %6, %38 : vector<1x256xi32>
    %40 = arith.andi %37, %39 : vector<1x256xi1>
    %c2 = arith.constant 2 : index
    %c0_17 = arith.constant 0 : index
    %c0_18 = arith.constant 0 : index
    %41 = vector.load %arg3[%c2, %c0_17, %c0_18] : memref<4x4x8xf32, #tpu.memory_space<vmem>>, vector<1x4x8xf32>
    %42 = vector.shape_cast %41 : vector<1x4x8xf32> to vector<4x8xf32>
    %cst_19 = arith.constant dense<0.000000e+00> : vector<4x256xf32>
    %43 = tpu.matmul %42, %8, %cst_19 {dimension_numbers = #tpu.dot_dimension_numbers<[1], [0], [0], [1], [0, 0, 1, 1], [], []>} : vector<4x8xf32>, vector<8x256xf32>, vector<4x256xf32> -> vector<4x256xf32>
    %cst_20 = arith.constant 0.000000e+00 : f32
    %44 = vector.shape_cast %40 : vector<1x256xi1> to vector<1x256xi1>
    %45 = vector.broadcast %44 : vector<1x256xi1> to vector<4x256xi1>
    %46 = vector.broadcast %cst_20 : f32 to vector<4x256xf32>
    %47 = arith.select %45, %43, %46 : vector<4x256xi1>, vector<4x256xf32>
    %48 = arith.addf %35, %47 : vector<4x256xf32>
    %c1_i32_21 = arith.constant 1 : i32
    %49 = vector.broadcast %c1_i32_21 : i32 to vector<1x256xi32>
    %50 = arith.cmpi eq, %4, %49 : vector<1x256xi32>
    %c1_i32_22 = arith.constant 1 : i32
    %51 = vector.broadcast %c1_i32_22 : i32 to vector<1x256xi32>
    %52 = arith.cmpi eq, %6, %51 : vector<1x256xi32>
    %53 = arith.andi %50, %52 : vector<1x256xi1>
    %c3 = arith.constant 3 : index
    %c0_23 = arith.constant 0 : index
    %c0_24 = arith.constant 0 : index
    %54 = vector.load %arg3[%c3, %c0_23, %c0_24] : memref<4x4x8xf32, #tpu.memory_space<vmem>>, vector<1x4x8xf32>
    %55 = vector.shape_cast %54 : vector<1x4x8xf32> to vector<4x8xf32>
    %cst_25 = arith.constant dense<0.000000e+00> : vector<4x256xf32>
    %56 = tpu.matmul %55, %8, %cst_25 {dimension_numbers = #tpu.dot_dimension_numbers<[1], [0], [0], [1], [0, 0, 1, 1], [], []>} : vector<4x8xf32>, vector<8x256xf32>, vector<4x256xf32> -> vector<4x256xf32>
    %cst_26 = arith.constant 0.000000e+00 : f32
    %57 = vector.shape_cast %53 : vector<1x256xi1> to vector<1x256xi1>
    %58 = vector.broadcast %57 : vector<1x256xi1> to vector<4x256xi1>
    %59 = vector.broadcast %cst_26 : f32 to vector<4x256xf32>
    %60 = arith.select %58, %56, %59 : vector<4x256xi1>, vector<4x256xf32>
    %61 = arith.addf %48, %60 : vector<4x256xf32>
    %c0_27 = arith.constant 0 : index
    %c0_28 = arith.constant 0 : index
    %62 = vector.load %arg4[%c0_27, %c0_28] : memref<4x1xf32, #tpu.memory_space<vmem>>, vector<4x1xf32>
    %63 = vector.broadcast %62 : vector<4x1xf32> to vector<4x256xf32>
    %64 = arith.addf %61, %63 : vector<4x256xf32>
    %c0_29 = arith.constant 0 : index
    %c0_30 = arith.constant 0 : index
    %65 = vector.load %arg10[%c0_29, %c0_30] : memref<8x256xf32, #tpu.memory_space<vmem>>, vector<4x256xf32>
    tpu.vector_store %arg10[%c0_29, %c0_30], %64 {strides = array<i32>} : memref<8x256xf32, #tpu.memory_space<vmem>>, vector<4x256xf32>,
    %c0_31 = arith.constant 0 : index
    %c0_32 = arith.constant 0 : index
    %c0_33 = arith.constant 0 : index
    %66 = vector.load %arg2[%c0_31, %c0_32, %c0_33] : memref<1x4x256xf32, #tpu.memory_space<vmem>>, vector<1x4x256xf32>
    %67 = vector.shape_cast %66 : vector<1x4x256xf32> to vector<4x256xf32>
    %c4 = arith.constant 4 : index
    %c0_34 = arith.constant 0 : index
    %68 = vector.load %arg10[%c4, %c0_34] : memref<8x256xf32, #tpu.memory_space<vmem>>, vector<4x256xf32>
    tpu.vector_store %arg10[%c4, %c0_34], %67 {strides = array<i32>} : memref<8x256xf32, #tpu.memory_space<vmem>>, vector<4x256xf32>,
    %c0_35 = arith.constant 0 : index
    %c0_36 = arith.constant 0 : index
    %69 = vector.load %arg10[%c0_35, %c0_36] : memref<8x256xf32, #tpu.memory_space<vmem>>, vector<8x256xf32>
    %70 = tpu.iota {dimensions = array<i32: 1>} : vector<1x256xi32>
    %c15_i32 = arith.constant 15 : i32
    %71 = vector.broadcast %c15_i32 : i32 to vector<1x256xi32>
    %72 = arith.andi %70, %71 : vector<1x256xi32>
    %c16_i32 = arith.constant 16 : i32
    %73 = vector.broadcast %c16_i32 : i32 to vector<1x256xi32>
    %74 = arith.cmpi sge, %70, %73 : vector<1x256xi32>
    %c240_i32 = arith.constant 240 : i32
    %75 = vector.broadcast %c240_i32 : i32 to vector<1x256xi32>
    %76 = arith.cmpi slt, %70, %75 : vector<1x256xi32>
    %c1_i32_37 = arith.constant 1 : i32
    %77 = vector.broadcast %c1_i32_37 : i32 to vector<1x256xi32>
    %78 = arith.cmpi sge, %72, %77 : vector<1x256xi32>
    %c15_i32_38 = arith.constant 15 : i32
    %79 = vector.broadcast %c15_i32_38 : i32 to vector<1x256xi32>
    %80 = arith.cmpi slt, %72, %79 : vector<1x256xi32>
    %c17_i32 = arith.constant 17 : i32
    %81 = tpu.dynamic_rotate %69 by %c17_i32 dim 1 : vector<8x256xf32>, i32 -> vector<8x256xf32>
    %82 = arith.andi %74, %78 : vector<1x256xi1>
    %cst_39 = arith.constant 0.000000e+00 : f32
    %83 = vector.shape_cast %82 : vector<1x256xi1> to vector<1x256xi1>
    %84 = vector.broadcast %83 : vector<1x256xi1> to vector<8x256xi1>
    %85 = vector.broadcast %cst_39 : f32 to vector<8x256xf32>
    %86 = arith.select %84, %81, %85 : vector<8x256xi1>, vector<8x256xf32>
    %c0_40 = arith.constant 0 : index
    %c0_41 = arith.constant 0 : index
    %87 = vector.load %arg11[%c0_40, %c0_41] : memref<72x256xf32, #tpu.memory_space<vmem>>, vector<8x256xf32>
    tpu.vector_store %arg11[%c0_40, %c0_41], %86 {strides = array<i32>} : memref<72x256xf32, #tpu.memory_space<vmem>>, vector<8x256xf32>,
    %c16_i32_42 = arith.constant 16 : i32
    %88 = tpu.dynamic_rotate %69 by %c16_i32_42 dim 1 : vector<8x256xf32>, i32 -> vector<8x256xf32>
    %cst_43 = arith.constant 0.000000e+00 : f32
    %89 = vector.shape_cast %74 : vector<1x256xi1> to vector<1x256xi1>
    %90 = vector.broadcast %89 : vector<1x256xi1> to vector<8x256xi1>
    %91 = vector.broadcast %cst_43 : f32 to vector<8x256xf32>
    %92 = arith.select %90, %88, %91 : vector<8x256xi1>, vector<8x256xf32>
    %c8 = arith.constant 8 : index
    %c0_44 = arith.constant 0 : index
    %93 = vector.load %arg11[%c8, %c0_44] : memref<72x256xf32, #tpu.memory_space<vmem>>, vector<8x256xf32>
    tpu.vector_store %arg11[%c8, %c0_44], %92 {strides = array<i32>} : memref<72x256xf32, #tpu.memory_space<vmem>>, vector<8x256xf32>,
    %c15_i32_45 = arith.constant 15 : i32
    %94 = tpu.dynamic_rotate %69 by %c15_i32_45 dim 1 : vector<8x256xf32>, i32 -> vector<8x256xf32>
    %95 = arith.andi %74, %80 : vector<1x256xi1>
    %cst_46 = arith.constant 0.000000e+00 : f32
    %96 = vector.shape_cast %95 : vector<1x256xi1> to vector<1x256xi1>
    %97 = vector.broadcast %96 : vector<1x256xi1> to vector<8x256xi1>
    %98 = vector.broadcast %cst_46 : f32 to vector<8x256xf32>
    %99 = arith.select %97, %94, %98 : vector<8x256xi1>, vector<8x256xf32>
    %c16 = arith.constant 16 : index
    %c0_47 = arith.constant 0 : index
    %100 = vector.load %arg11[%c16, %c0_47] : memref<72x256xf32, #tpu.memory_space<vmem>>, vector<8x256xf32>
    tpu.vector_store %arg11[%c16, %c0_47], %99 {strides = array<i32>} : memref<72x256xf32, #tpu.memory_space<vmem>>, vector<8x256xf32>,
    %c1_i32_48 = arith.constant 1 : i32
    %101 = tpu.dynamic_rotate %69 by %c1_i32_48 dim 1 : vector<8x256xf32>, i32 -> vector<8x256xf32>
    %cst_49 = arith.constant 0.000000e+00 : f32
    %102 = vector.shape_cast %78 : vector<1x256xi1> to vector<1x256xi1>
    %103 = vector.broadcast %102 : vector<1x256xi1> to vector<8x256xi1>
    %104 = vector.broadcast %cst_49 : f32 to vector<8x256xf32>
    %105 = arith.select %103, %101, %104 : vector<8x256xi1>, vector<8x256xf32>
    %c24 = arith.constant 24 : index
    %c0_50 = arith.constant 0 : index
    %106 = vector.load %arg11[%c24, %c0_50] : memref<72x256xf32, #tpu.memory_space<vmem>>, vector<8x256xf32>
    tpu.vector_store %arg11[%c24, %c0_50], %105 {strides = array<i32>} : memref<72x256xf32, #tpu.memory_space<vmem>>, vector<8x256xf32>,
    %c32 = arith.constant 32 : index
    %c0_51 = arith.constant 0 : index
    %107 = vector.load %arg11[%c32, %c0_51] : memref<72x256xf32, #tpu.memory_space<vmem>>, vector<8x256xf32>
    tpu.vector_store %arg11[%c32, %c0_51], %69 {strides = array<i32>} : memref<72x256xf32, #tpu.memory_space<vmem>>, vector<8x256xf32>,
    %c255_i32 = arith.constant 255 : i32
    %108 = tpu.dynamic_rotate %69 by %c255_i32 dim 1 : vector<8x256xf32>, i32 -> vector<8x256xf32>
    %cst_52 = arith.constant 0.000000e+00 : f32
    %109 = vector.shape_cast %80 : vector<1x256xi1> to vector<1x256xi1>
    %110 = vector.broadcast %109 : vector<1x256xi1> to vector<8x256xi1>
    %111 = vector.broadcast %cst_52 : f32 to vector<8x256xf32>
    %112 = arith.select %110, %108, %111 : vector<8x256xi1>, vector<8x256xf32>
    %c40 = arith.constant 40 : index
    %c0_53 = arith.constant 0 : index
    %113 = vector.load %arg11[%c40, %c0_53] : memref<72x256xf32, #tpu.memory_space<vmem>>, vector<8x256xf32>
    tpu.vector_store %arg11[%c40, %c0_53], %112 {strides = array<i32>} : memref<72x256xf32, #tpu.memory_space<vmem>>, vector<8x256xf32>,
    %c241_i32 = arith.constant 241 : i32
    %114 = tpu.dynamic_rotate %69 by %c241_i32 dim 1 : vector<8x256xf32>, i32 -> vector<8x256xf32>
    %115 = arith.andi %76, %78 : vector<1x256xi1>
    %cst_54 = arith.constant 0.000000e+00 : f32
    %116 = vector.shape_cast %115 : vector<1x256xi1> to vector<1x256xi1>
    %117 = vector.broadcast %116 : vector<1x256xi1> to vector<8x256xi1>
    %118 = vector.broadcast %cst_54 : f32 to vector<8x256xf32>
    %119 = arith.select %117, %114, %118 : vector<8x256xi1>, vector<8x256xf32>
    %c48 = arith.constant 48 : index
    %c0_55 = arith.constant 0 : index
    %120 = vector.load %arg11[%c48, %c0_55] : memref<72x256xf32, #tpu.memory_space<vmem>>, vector<8x256xf32>
    tpu.vector_store %arg11[%c48, %c0_55], %119 {strides = array<i32>} : memref<72x256xf32, #tpu.memory_space<vmem>>, vector<8x256xf32>,
    %c240_i32_56 = arith.constant 240 : i32
    %121 = tpu.dynamic_rotate %69 by %c240_i32_56 dim 1 : vector<8x256xf32>, i32 -> vector<8x256xf32>
    %cst_57 = arith.constant 0.000000e+00 : f32
    %122 = vector.shape_cast %76 : vector<1x256xi1> to vector<1x256xi1>
    %123 = vector.broadcast %122 : vector<1x256xi1> to vector<8x256xi1>
    %124 = vector.broadcast %cst_57 : f32 to vector<8x256xf32>
    %125 = arith.select %123, %121, %124 : vector<8x256xi1>, vector<8x256xf32>
    %c56 = arith.constant 56 : index
    %c0_58 = arith.constant 0 : index
    %126 = vector.load %arg11[%c56, %c0_58] : memref<72x256xf32, #tpu.memory_space<vmem>>, vector<8x256xf32>
    tpu.vector_store %arg11[%c56, %c0_58], %125 {strides = array<i32>} : memref<72x256xf32, #tpu.memory_space<vmem>>, vector<8x256xf32>,
    %c239_i32 = arith.constant 239 : i32
    %127 = tpu.dynamic_rotate %69 by %c239_i32 dim 1 : vector<8x256xf32>, i32 -> vector<8x256xf32>
    %128 = arith.andi %76, %80 : vector<1x256xi1>
    %cst_59 = arith.constant 0.000000e+00 : f32
    %129 = vector.shape_cast %128 : vector<1x256xi1> to vector<1x256xi1>
    %130 = vector.broadcast %129 : vector<1x256xi1> to vector<8x256xi1>
    %131 = vector.broadcast %cst_59 : f32 to vector<8x256xf32>
    %132 = arith.select %130, %127, %131 : vector<8x256xi1>, vector<8x256xf32>
    %c64 = arith.constant 64 : index
    %c0_60 = arith.constant 0 : index
    %133 = vector.load %arg11[%c64, %c0_60] : memref<72x256xf32, #tpu.memory_space<vmem>>, vector<8x256xf32>
    tpu.vector_store %arg11[%c64, %c0_60], %132 {strides = array<i32>} : memref<72x256xf32, #tpu.memory_space<vmem>>, vector<8x256xf32>,
    %c0_61 = arith.constant 0 : index
    %c0_62 = arith.constant 0 : index
    %134 = vector.load %arg5[%c0_61, %c0_62] : memref<4x72xf32, #tpu.memory_space<vmem>>, vector<4x72xf32>
    %c0_63 = arith.constant 0 : index
    %c0_64 = arith.constant 0 : index
    %135 = vector.load %arg11[%c0_63, %c0_64] : memref<72x256xf32, #tpu.memory_space<vmem>>, vector<72x256xf32>
    %cst_65 = arith.constant dense<0.000000e+00> : vector<4x256xf32>
    %136 = tpu.matmul %134, %135, %cst_65 {dimension_numbers = #tpu.dot_dimension_numbers<[1], [0], [0], [1], [0, 0, 1, 1], [], []>} : vector<4x72xf32>, vector<72x256xf32>, vector<4x256xf32> -> vector<4x256xf32>
    %c0_66 = arith.constant 0 : index
    %c0_67 = arith.constant 0 : index
    %137 = vector.load %arg6[%c0_66, %c0_67] : memref<4x1xf32, #tpu.memory_space<vmem>>, vector<4x1xf32>
    %138 = vector.broadcast %137 : vector<4x1xf32> to vector<4x256xf32>
    %139 = arith.addf %136, %138 : vector<4x256xf32>
    %c0_68 = arith.constant 0 : index
    %c0_69 = arith.constant 0 : index
    %c0_70 = arith.constant 0 : index
    %140 = vector.load %arg7[%c0_68, %c0_69, %c0_70] : memref<1x4x256xf32, #tpu.memory_space<vmem>>, vector<1x4x256xf32>
    %141 = vector.shape_cast %140 : vector<1x4x256xf32> to vector<4x256xf32>
    %142 = vector.shape_cast %139 : vector<4x256xf32> to vector<1x4x256xf32>
    tpu.vector_store %arg7[%c0_68, %c0_69, %c0_70], %142 {strides = array<i32>} : memref<1x4x256xf32, #tpu.memory_space<vmem>>, vector<1x4x256xf32>,
    %cst_71 = arith.constant dense<0.000000e+00> : vector<4xf32>
    %143 = vector.multi_reduction <add>, %139, %cst_71 [1] : vector<4x256xf32> to vector<4xf32>
    %144 = vector.shape_cast %143 : vector<4xf32> to vector<4x1xf32>
    %c0_72 = arith.constant 0 : index
    %c0_73 = arith.constant 0 : index
    %c0_74 = arith.constant 0 : index
    %145 = vector.load %arg8[%c0_72, %c0_73, %c0_74] : memref<1x4x1xf32, #tpu.memory_space<vmem>>, vector<1x4x1xf32>
    %146 = vector.shape_cast %145 : vector<1x4x1xf32> to vector<4x1xf32>
    %147 = vector.shape_cast %144 : vector<4x1xf32> to vector<1x4x1xf32>
    tpu.vector_store %arg8[%c0_72, %c0_73, %c0_74], %147 {strides = array<i32>} : memref<1x4x1xf32, #tpu.memory_space<vmem>>, vector<1x4x1xf32>,
    %148 = arith.mulf %139, %139 : vector<4x256xf32>
    %cst_75 = arith.constant dense<0.000000e+00> : vector<4xf32>
    %149 = vector.multi_reduction <add>, %148, %cst_75 [1] : vector<4x256xf32> to vector<4xf32>
    %150 = vector.shape_cast %149 : vector<4xf32> to vector<4x1xf32>
    %c0_76 = arith.constant 0 : index
    %c0_77 = arith.constant 0 : index
    %c0_78 = arith.constant 0 : index
    %151 = vector.load %arg9[%c0_76, %c0_77, %c0_78] : memref<1x4x1xf32, #tpu.memory_space<vmem>>, vector<1x4x1xf32>
    %152 = vector.shape_cast %151 : vector<1x4x1xf32> to vector<4x1xf32>
    %153 = vector.shape_cast %150 : vector<4x1xf32> to vector<1x4x1xf32>
    tpu.vector_store %arg9[%c0_76, %c0_77, %c0_78], %153 {strides = array<i32>} : memref<1x4x1xf32, #tpu.memory_space<vmem>>, vector<1x4x1xf32>,
    return
  }
  func.func @transform_0(%arg0: i32) -> (i32, i32, i32) {
    %c0_i32 = arith.constant 0 : i32
    %c0_i32_0 = arith.constant 0 : i32
    %c0_i32_1 = arith.constant 0 : i32
    return %arg0, %c0_i32, %c0_i32_0 : i32, i32, i32
  }
  func.func @transform_1(%arg0: i32) -> (i32, i32, i32) {
    %c0_i32 = arith.constant 0 : i32
    %c0_i32_0 = arith.constant 0 : i32
    %c0_i32_1 = arith.constant 0 : i32
    return %arg0, %c0_i32, %c0_i32_0 : i32, i32, i32
  }
  func.func @transform_2(%arg0: i32) -> (i32, i32, i32) {
    %c0_i32 = arith.constant 0 : i32
    %c0_i32_0 = arith.constant 0 : i32
    %c0_i32_1 = arith.constant 0 : i32
    %c0_i32_2 = arith.constant 0 : i32
    return %c0_i32, %c0_i32_0, %c0_i32_1 : i32, i32, i32
  }
  func.func @transform_3(%arg0: i32) -> (i32, i32) {
    %c0_i32 = arith.constant 0 : i32
    %c0_i32_0 = arith.constant 0 : i32
    %c0_i32_1 = arith.constant 0 : i32
    return %c0_i32, %c0_i32_0 : i32, i32
  }
  func.func @transform_4(%arg0: i32) -> (i32, i32) {
    %c0_i32 = arith.constant 0 : i32
    %c0_i32_0 = arith.constant 0 : i32
    %c0_i32_1 = arith.constant 0 : i32
    return %c0_i32, %c0_i32_0 : i32, i32
  }
  func.func @transform_5(%arg0: i32) -> (i32, i32) {
    %c0_i32 = arith.constant 0 : i32
    %c0_i32_0 = arith.constant 0 : i32
    %c0_i32_1 = arith.constant 0 : i32
    return %c0_i32, %c0_i32_0 : i32, i32
  }
  func.func @transform_6(%arg0: i32) -> (i32, i32, i32) {
    %c0_i32 = arith.constant 0 : i32
    %c0_i32_0 = arith.constant 0 : i32
    %c0_i32_1 = arith.constant 0 : i32
    return %arg0, %c0_i32, %c0_i32_0 : i32, i32, i32
  }
  func.func @transform_7(%arg0: i32) -> (i32, i32, i32) {
    %c0_i32 = arith.constant 0 : i32
    %c0_i32_0 = arith.constant 0 : i32
    %c0_i32_1 = arith.constant 0 : i32
    return %arg0, %c0_i32, %c0_i32_0 : i32, i32, i32
  }
  func.func @transform_8(%arg0: i32) -> (i32, i32, i32) {
    %c0_i32 = arith.constant 0 : i32
    %c0_i32_0 = arith.constant 0 : i32
    %c0_i32_1 = arith.constant 0 : i32
    return %arg0, %c0_i32, %c0_i32_0 : i32, i32, i32
  }
}

module attributes {stable_mosaic.version = 11 : i64} {
  func.func @bn_relu_kernel(%arg0: i32, %arg1: memref<1x4x256xf32, #tpu.memory_space<vmem>>, %arg2: memref<4x1xf32, #tpu.memory_space<vmem>>, %arg3: memref<4x1xf32, #tpu.memory_space<vmem>>, %arg4: memref<1x4x256xf32, #tpu.memory_space<vmem>>) attributes {dimension_semantics = [#tpu.dimension_semantics<parallel>], iteration_bounds = array<i64: 2>, scalar_prefetch = 0 : i64, scratch_operands = 0 : i64, tpu.core_type = #tpu.core_type<tc>, window_params = [{transform_indices = @transform_0, window_bounds = array<i64: 1, 4, 256>}, {pipeline_mode = #tpu.pipeline_mode<synchronous>, transform_indices = @transform_1, window_bounds = array<i64: 4, 1>}, {pipeline_mode = #tpu.pipeline_mode<synchronous>, transform_indices = @transform_2, window_bounds = array<i64: 4, 1>}, {transform_indices = @transform_3, window_bounds = array<i64: 1, 4, 256>}]} {
    %c0 = arith.constant 0 : index
    %c0_0 = arith.constant 0 : index
    %c0_1 = arith.constant 0 : index
    %0 = vector.load %arg1[%c0, %c0_0, %c0_1] : memref<1x4x256xf32, #tpu.memory_space<vmem>>, vector<1x4x256xf32>
    %1 = vector.shape_cast %0 : vector<1x4x256xf32> to vector<4x256xf32>
    %c0_2 = arith.constant 0 : index
    %c0_3 = arith.constant 0 : index
    %2 = vector.load %arg2[%c0_2, %c0_3] : memref<4x1xf32, #tpu.memory_space<vmem>>, vector<4x1xf32>
    %3 = vector.broadcast %2 : vector<4x1xf32> to vector<4x256xf32>
    %4 = arith.mulf %1, %3 : vector<4x256xf32>
    %c0_4 = arith.constant 0 : index
    %c0_5 = arith.constant 0 : index
    %5 = vector.load %arg3[%c0_4, %c0_5] : memref<4x1xf32, #tpu.memory_space<vmem>>, vector<4x1xf32>
    %6 = vector.broadcast %5 : vector<4x1xf32> to vector<4x256xf32>
    %7 = arith.addf %4, %6 : vector<4x256xf32>
    %cst = arith.constant 0.000000e+00 : f32
    %8 = vector.broadcast %cst : f32 to vector<4x256xf32>
    %9 = arith.maximumf %7, %8 : vector<4x256xf32>
    %c0_6 = arith.constant 0 : index
    %c0_7 = arith.constant 0 : index
    %c0_8 = arith.constant 0 : index
    %10 = vector.load %arg4[%c0_6, %c0_7, %c0_8] : memref<1x4x256xf32, #tpu.memory_space<vmem>>, vector<1x4x256xf32>
    %11 = vector.shape_cast %10 : vector<1x4x256xf32> to vector<4x256xf32>
    %12 = vector.shape_cast %9 : vector<4x256xf32> to vector<1x4x256xf32>
    tpu.vector_store %arg4[%c0_6, %c0_7, %c0_8], %12 {strides = array<i32>} : memref<1x4x256xf32, #tpu.memory_space<vmem>>, vector<1x4x256xf32>,
    return
  }
  func.func @transform_0(%arg0: i32) -> (i32, i32, i32) {
    %c0_i32 = arith.constant 0 : i32
    %c0_i32_0 = arith.constant 0 : i32
    %c0_i32_1 = arith.constant 0 : i32
    return %arg0, %c0_i32, %c0_i32_0 : i32, i32, i32
  }
  func.func @transform_1(%arg0: i32) -> (i32, i32) {
    %c0_i32 = arith.constant 0 : i32
    %c0_i32_0 = arith.constant 0 : i32
    %c0_i32_1 = arith.constant 0 : i32
    return %c0_i32, %c0_i32_0 : i32, i32
  }
  func.func @transform_2(%arg0: i32) -> (i32, i32) {
    %c0_i32 = arith.constant 0 : i32
    %c0_i32_0 = arith.constant 0 : i32
    %c0_i32_1 = arith.constant 0 : i32
    return %c0_i32, %c0_i32_0 : i32, i32
  }
  func.func @transform_3(%arg0: i32) -> (i32, i32, i32) {
    %c0_i32 = arith.constant 0 : i32
    %c0_i32_0 = arith.constant 0 : i32
    %c0_i32_1 = arith.constant 0 : i32
    return %arg0, %c0_i32, %c0_i32_0 : i32, i32, i32
  }
}

</mosaic_0001>

<llo_original>
// kernel: decoder_block_forward.5
$region0: #{decoder_block_forward.5}
  #allocation0 [shape = 'u32[]', space=smem, size = 0x4, offset = 0x4, fixed_abs, tag = 'smem constant byte address 0x4 - core index']
  #allocation1 [shape = 'u32[144,128]{1,0:T(1,128)}', space=vmem, size = 0x12000, scoped, tag = 'internal scratch']
  %s0 = inlined_call_operand.vmem [shape: f32[2,4,256], index: 0, kind: input, shape index: {}]
  %s1 = inlined_call_operand.vmem [shape: f32[4,1], index: 1, kind: input, shape index: {}]
  %s2 = inlined_call_operand.vmem [shape: f32[4,1], index: 2, kind: input, shape index: {}]
  %s3 = inlined_call_operand.vmem [shape: f32[2,4,256], index: 3, kind: output, shape index: {}]
  %s4 = sld [smem:[#allocation0]]
  $region45: #{decoder_block_forward.5} parent=0
    _
  %s6 = ssub.s32 1, %s4
  %s7 = scalar_select 0, %s6, %s4
  loop: start=0, step=1, limit=4
  $region2: #{decoder_block_forward.5} parent=0 // loop_pre_header
    _
  $region3: #{decoder_block_forward.5} parent=0 // loop_header
    %s9 = sphi 0, %s13
    %p10 = scmp.ge.s32.totalorder %s9, 4
    %s19 = sphi 0, %s21
    %s22 = sphi 0, %s19
    %s23 = sphi 0, %s22
    %s39 = sphi 0, %s23
    %s43 = sphi 0, %s43
    %s45 = sphi 0, %s43
    %s46 = sphi 0, %s45
    %s60 = sphi 0, %s46
    %s64 = sphi 0, %s64
    %s66 = sphi 0, %s64
    %s67 = sphi 0, %s66
    %s81 = sphi 0, %s67
    %s87 = sphi 0, %s89
    %s90 = sphi 0, %s87
    %s91 = sphi 0, %s90
    %s107 = sphi 0, %s91
  $region4: #{decoder_block_forward.5} parent=0 // loop_header_branch
    %12 = sbr.rel (%p10) target = $region8
  $region5: #{decoder_block_forward.5} parent=0 // loop_body
    %s14 = ssub.s32 %s9, 1
    %s15 = ssub.s32 %s9, 2
    %s16 = sadd.s32 %s9, 1
    %s17 = ssub.s32 %s9, %s16
    %p18 = scmp.eq.s32.totalorder %s17, 0
    %s20 = sadd.s32 %s19, 1
    %s21 = scalar_select %p18, %s19, %s20
    %p24 = pneg %p18
    %p25 = scmp.eq.s32.totalorder %s9, 1
    %p26 = por %p24, %p25
    %p27 = scmp.ne.s32.totalorder %s19, %s22
    %p28 = scmp.eq.s32.totalorder %s9, 0
    %p29 = por %p27, %p28
    %p30 = scmp.ne.s32.totalorder %s19, %s22
    %p31 = scmp.eq.s32.totalorder %s14, 1
    %p32 = por %p30, %p31
    %p33 = scmp.ne.s32.totalorder %s22, %s23
    %p34 = scmp.eq.s32.totalorder %s14, 0
    %p35 = por %p33, %p34
    %p36 = scmp.ne.s32.totalorder %s22, %s23
    %p37 = scmp.eq.s32.totalorder %s15, 1
    %p38 = por %p36, %p37
    %p40 = scmp.ne.s32.totalorder %s23, %s39
    %p41 = scmp.eq.s32.totalorder %s15, 0
    %p42 = por %p40, %p41
    %s44 = sadd.s32 %s43, 1
    %p47 = scmp.eq.s32.totalorder %s9, 1
    %p48 = scmp.ne.s32.totalorder %s43, %s45
    %p49 = scmp.eq.s32.totalorder %s9, 0
    %p50 = por %p48, %p49
    %p51 = scmp.ne.s32.totalorder %s43, %s45
    %p52 = scmp.eq.s32.totalorder %s14, 1
    %p53 = por %p51, %p52
    %p54 = scmp.ne.s32.totalorder %s45, %s46
    %p55 = scmp.eq.s32.totalorder %s14, 0
    %p56 = por %p54, %p55
    %p57 = scmp.ne.s32.totalorder %s45, %s46
    %p58 = scmp.eq.s32.totalorder %s15, 1
    %p59 = por %p57, %p58
    %p61 = scmp.ne.s32.totalorder %s46, %s60
    %p62 = scmp.eq.s32.totalorder %s15, 0
    %p63 = por %p61, %p62
    %s65 = sadd.s32 %s64, 1
    %p68 = scmp.eq.s32.totalorder %s9, 1
    %p69 = scmp.ne.s32.totalorder %s64, %s66
    %p70 = scmp.eq.s32.totalorder %s9, 0
    %p71 = por %p69, %p70
    %p72 = scmp.ne.s32.totalorder %s64, %s66
    %p73 = scmp.eq.s32.totalorder %s14, 1
    %p74 = por %p72, %p73
    %p75 = scmp.ne.s32.totalorder %s66, %s67
    %p76 = scmp.eq.s32.totalorder %s14, 0
    %p77 = por %p75, %p76
    %p78 = scmp.ne.s32.totalorder %s66, %s67
    %p79 = scmp.eq.s32.totalorder %s15, 1
    %p80 = por %p78, %p79
    %p82 = scmp.ne.s32.totalorder %s67, %s81
    %p83 = scmp.eq.s32.totalorder %s15, 0
    %p84 = por %p82, %p83
    %s85 = ssub.s32 %s9, %s16
    %p86 = scmp.eq.s32.totalorder %s85, 0
    %s88 = sadd.s32 %s87, 1
    %s89 = scalar_select %p86, %s87, %s88
    %p92 = pneg %p86
    %p93 = scmp.eq.s32.totalorder %s9, 1
    %p94 = por %p92, %p93
    %p95 = scmp.ne.s32.totalorder %s87, %s90
    %p96 = scmp.eq.s32.totalorder %s9, 0
    %p97 = por %p95, %p96
    %p98 = scmp.ne.s32.totalorder %s87, %s90
    %p99 = scmp.eq.s32.totalorder %s14, 1
    %p100 = por %p98, %p99
    %p101 = scmp.ne.s32.totalorder %s90, %s91
    %p102 = scmp.eq.s32.totalorder %s14, 0
    %p103 = por %p101, %p102
    %p104 = scmp.ne.s32.totalorder %s90, %s91
    %p105 = scmp.eq.s32.totalorder %s15, 1
    %p106 = por %p104, %p105
    %p108 = scmp.ne.s32.totalorder %s91, %s107
    %p109 = scmp.eq.s32.totalorder %s15, 0
    %p110 = por %p108, %p109
    %p111 = scmp.le.s32.totalorder 1, %s9
    %p112 = scmp.lt.s32.totalorder %s9, 3
    %p113 = pnand %p111, %p112
    %p114 = pneg %p113
    // Predicated region
    $region9: #{decoder_block_forward.5} parent=5 // pred_check
      _
    $region10: #{decoder_block_forward.5} parent=5 // pred_check_branch
      %116 = sbr.rel (%p113) target = $region12
    $region11: #{decoder_block_forward.5} parent=5 // pred_region
      %s117 = ssub.s32 %s9, 1
      // Predicated region
      $region13: #{decoder_block_forward.5} parent=11 // pred_check
        %p118 = pneg %p56
      $region14: #{decoder_block_forward.5} parent=11 // pred_check_branch
        %120 = sbr.rel (%p118) target = $region16
      $region15: #{decoder_block_forward.5} parent=11 // pred_region
        _
      $region16: #{decoder_block_forward.5} parent=11 // pred_fallthru
        _
      // Predicated region
      $region17: #{decoder_block_forward.5} parent=11 // pred_check
        %p121 = pneg %p77
      $region18: #{decoder_block_forward.5} parent=11 // pred_check_branch
        %123 = sbr.rel (%p121) target = $region20
      $region19: #{decoder_block_forward.5} parent=11 // pred_region
        _
      $region20: #{decoder_block_forward.5} parent=11 // pred_fallthru
        _
    $region12: #{decoder_block_forward.5} parent=5 // pred_fallthru
      _
    %p124 = scmp.lt.s32.totalorder %s9, 2
    // Predicated region
    $region21: #{decoder_block_forward.5} parent=5 // pred_check
      %p125 = pneg %p124
    $region22: #{decoder_block_forward.5} parent=5 // pred_check_branch
      %127 = sbr.rel (%p125) target = $region24
    $region23: #{decoder_block_forward.5} parent=5 // pred_region
      // Predicated region
      $region25: #{decoder_block_forward.5} parent=23 // pred_check
        %p128 = pneg %p29
      $region26: #{decoder_block_forward.5} parent=23 // pred_check_branch
        %130 = sbr.rel (%p128) target = $region28
      $region27: #{decoder_block_forward.5} parent=23 // pred_region
        %p131 = scmp.lt.s32.totalorder %s9, 1
        %s132 = scalar_select %p131, %s9, 1
        %s133 = smul.addr %s132, 2
        %s134 = smul.addr %s133, 4
        %s135 = scalar_lea.vmem %s0, %s134
      $region28: #{decoder_block_forward.5} parent=23 // pred_fallthru
        _
    $region24: #{decoder_block_forward.5} parent=5 // pred_fallthru
      _
    %p136 = scmp.le.s32.totalorder 1, %s9
    %p137 = scmp.lt.s32.totalorder %s9, 3
    %p138 = pnand %p136, %p137
    %p139 = pneg %p138
    // Predicated region
    $region29: #{decoder_block_forward.5} parent=5 // pred_check
      _
    $region30: #{decoder_block_forward.5} parent=5 // pred_check_branch
      %141 = sbr.rel (%p138) target = $region32
    $region31: #{decoder_block_forward.5} parent=5 // pred_region
      %s142 = ssub.s32 %s9, 1
      %p143 = scmp.lt.s32.totalorder %s14, 1
      %s144 = scalar_select %p143, %s14, 1
      %s145 = smul.addr %s144, 2
      %s146 = smul.addr %s145, 4
      %s147 = scalar_lea.vmem %s0, %s146
      %p148 = pneg %p35
      %p149 = pneg %p32
      %p150 = pneg %p56
      %p151 = pneg %p53
      %p152 = pneg %p77
      %p153 = pneg %p74
      %p154 = pneg %p103
      %p155 = pneg %p100
      %p156 = scmp.lt.s32.totalorder %s14, 1
      %s157 = scalar_select %p156, %s14, 1
      %s158 = smul.addr %s157, 2
      %s159 = smul.addr %s158, 4
      %s160 = scalar_lea.vmem %s3, %s159
      %p161 = scmp.lt.s32.totalorder %s14, 1
      %s162 = scalar_select %p161, %s14, 1
      %s163 = smul.addr %s162, 2
      %s164 = smul.addr %s163, 4
      %s165 = scalar_lea.vmem %s0, %s164
      %p166 = scmp.lt.s32.totalorder %s14, 1
      %s167 = scalar_select %p166, %s14, 1
      %s168 = smul.addr %s167, 2
      %s169 = smul.addr %s168, 4
      %s170 = scalar_lea.vmem %s3, %s169
      %v171 = vld [vmem:[%s165] sm:$0xff]
      %v172 = vld [vmem:[%s1] sm:$0xf]
      %174 = vset.pattern.permute.xlu0 0
      %175 = vperm.xlu0 %174, %v172
      %v176 = vpop.permute.xlu0 %175
      %v178 = vunpack.c.l.s4 839922192
      %v179 = vunpack.c.0.s8 %v178
      %v180 = vlaneseq
      %v181 = vshrl.u32 %v180, 7
      %v182 = vsub.s32 %v179, %v181
      %v183 = vrot.slane %v176, %v182
      %v185 = vmul.f32 %v171, %v183
      %v186 = vld [vmem:[%s2] sm:$0xf]
      %188 = vset.pattern.permute.xlu0 0
      %189 = vperm.xlu0 %188, %v186
      %v190 = vpop.permute.xlu0 %189
      %v192 = vunpack.c.l.s4 839922192
      %v193 = vunpack.c.0.s8 %v192
      %v194 = vlaneseq
      %v195 = vshrl.u32 %v194, 7
      %v196 = vsub.s32 %v193, %v195
      %v197 = vrot.slane %v190, %v196
      %v199 = vadd.f32 %v185, %v197
      %v200 = vmax.f32 %v199, 0.0
      %201 = vst [vmem:[%s170] sm:$0xff] %v200
      %p202 = scmp.lt.s32.totalorder %s14, 1
      %s203 = scalar_select %p202, %s14, 1
      %s204 = smul.addr %s203, 2
      %s205 = smul.addr %s204, 4
      %s206 = scalar_lea.vmem %s3, %s205
      // Predicated region
      $region33: #{decoder_block_forward.5} parent=31 // pred_check
        %p207 = pneg %p100
      $region34: #{decoder_block_forward.5} parent=31 // pred_check_branch
        %209 = sbr.rel (%p207) target = $region36
      $region35: #{decoder_block_forward.5} parent=31 // pred_region
        _
      $region36: #{decoder_block_forward.5} parent=31 // pred_fallthru
        _
    $region32: #{decoder_block_forward.5} parent=5 // pred_fallthru
      _
    %p210 = scmp.le.s32.totalorder 2, %s9
    // Predicated region
    $region37: #{decoder_block_forward.5} parent=5 // pred_check
      %p211 = pneg %p210
    $region38: #{decoder_block_forward.5} parent=5 // pred_check_branch
      %213 = sbr.rel (%p211) target = $region40
    $region39: #{decoder_block_forward.5} parent=5 // pred_region
      %s214 = ssub.s32 %s9, 2
      // Predicated region
      $region41: #{decoder_block_forward.5} parent=39 // pred_check
        %p215 = pneg %p106
      $region42: #{decoder_block_forward.5} parent=39 // pred_check_branch
        %217 = sbr.rel (%p215) target = $region44
      $region43: #{decoder_block_forward.5} parent=39 // pred_region
        %p218 = scmp.lt.s32.totalorder %s15, 1
        %s219 = scalar_select %p218, %s15, 1
        %s220 = smul.addr %s219, 2
        %s221 = smul.addr %s220, 4
        %s222 = scalar_lea.vmem %s3, %s221
      $region44: #{decoder_block_forward.5} parent=39 // pred_fallthru
        _
    $region40: #{decoder_block_forward.5} parent=5 // pred_fallthru
      _
  $region6: #{decoder_block_forward.5} parent=0 // loop_footer
    %s13 = sadd.s32 1, %s9
  $region7: #{decoder_block_forward.5} parent=0 // loop_footer_branch
    %8 = sbr.rel target = $region3
  $region8: #{decoder_block_forward.5} parent=0 // loop_exit
    _

// kernel: decoder_block_forward.4
$region0: #{decoder_block_forward.4}
  #allocation0 [shape = 'u32[]', space=smem, size = 0x4, offset = 0x4, fixed_abs, tag = 'smem constant byte address 0x4 - core index']
  #allocation1 [shape = 'u32[144,128]{1,0:T(1,128)}', space=vmem, size = 0x12000, scoped, tag = 'internal scratch']
  #allocation2 [shape = 'f32[36,256]{1,0:T(8,128)}', space=vmem, size = 0xa000, scoped, tag = 'scratch operand']
  %s0 = inlined_call_operand.vmem [shape: f32[2,4,256], index: 0, kind: input, shape index: {}]
  %s1 = inlined_call_operand.vmem [shape: f32[4,1], index: 1, kind: input, shape index: {}]
  %s2 = inlined_call_operand.vmem [shape: f32[4,1], index: 2, kind: input, shape index: {}]
  %s3 = inlined_call_operand.vmem [shape: f32[4,36], index: 3, kind: input, shape index: {}]
  %s4 = inlined_call_operand.vmem [shape: f32[4,1], index: 4, kind: input, shape index: {}]
  %s5 = inlined_call_operand.vmem [shape: f32[2,4,256], index: 5, kind: output, shape index: {0}]
  %s6 = inlined_call_operand.vmem [shape: f32[2,4,1], index: 6, kind: output, shape index: {1}]
  %s7 = inlined_call_operand.vmem [shape: f32[2,4,1], index: 7, kind: output, shape index: {2}]
  %8 = xla_tuple %s5, %s6, %s7
  %s9 = sld [smem:[#allocation0]]
  $region69: #{decoder_block_forward.4} parent=0
    _
  %s11 = ssub.s32 1, %s9
  %s12 = scalar_select 0, %s11, %s9
  loop: start=0, step=1, limit=4
  $region2: #{decoder_block_forward.4} parent=0 // loop_pre_header
    _
  $region3: #{decoder_block_forward.4} parent=0 // loop_header
    %s14 = sphi 0, %s18
    %p15 = scmp.ge.s32.totalorder %s14, 4
    %s24 = sphi 0, %s26
    %s27 = sphi 0, %s24
    %s28 = sphi 0, %s27
    %s44 = sphi 0, %s28
    %s48 = sphi 0, %s48
    %s50 = sphi 0, %s48
    %s51 = sphi 0, %s50
    %s65 = sphi 0, %s51
    %s69 = sphi 0, %s69
    %s71 = sphi 0, %s69
    %s72 = sphi 0, %s71
    %s86 = sphi 0, %s72
    %s90 = sphi 0, %s90
    %s92 = sphi 0, %s90
    %s93 = sphi 0, %s92
    %s107 = sphi 0, %s93
    %s111 = sphi 0, %s111
    %s113 = sphi 0, %s111
    %s114 = sphi 0, %s113
    %s128 = sphi 0, %s114
    %s134 = sphi 0, %s136
    %s137 = sphi 0, %s134
    %s138 = sphi 0, %s137
    %s154 = sphi 0, %s138
    %s160 = sphi 0, %s162
    %s163 = sphi 0, %s160
    %s164 = sphi 0, %s163
    %s180 = sphi 0, %s164
    %s186 = sphi 0, %s188
    %s189 = sphi 0, %s186
    %s190 = sphi 0, %s189
    %s206 = sphi 0, %s190
  $region4: #{decoder_block_forward.4} parent=0 // loop_header_branch
    %17 = sbr.rel (%p15) target = $region8
  $region5: #{decoder_block_forward.4} parent=0 // loop_body
    %s19 = ssub.s32 %s14, 1
    %s20 = ssub.s32 %s14, 2
    %s21 = sadd.s32 %s14, 1
    %s22 = ssub.s32 %s14, %s21
    %p23 = scmp.eq.s32.totalorder %s22, 0
    %s25 = sadd.s32 %s24, 1
    %s26 = scalar_select %p23, %s24, %s25
    %p29 = pneg %p23
    %p30 = scmp.eq.s32.totalorder %s14, 1
    %p31 = por %p29, %p30
    %p32 = scmp.ne.s32.totalorder %s24, %s27
    %p33 = scmp.eq.s32.totalorder %s14, 0
    %p34 = por %p32, %p33
    %p35 = scmp.ne.s32.totalorder %s24, %s27
    %p36 = scmp.eq.s32.totalorder %s19, 1
    %p37 = por %p35, %p36
    %p38 = scmp.ne.s32.totalorder %s27, %s28
    %p39 = scmp.eq.s32.totalorder %s19, 0
    %p40 = por %p38, %p39
    %p41 = scmp.ne.s32.totalorder %s27, %s28
    %p42 = scmp.eq.s32.totalorder %s20, 1
    %p43 = por %p41, %p42
    %p45 = scmp.ne.s32.totalorder %s28, %s44
    %p46 = scmp.eq.s32.totalorder %s20, 0
    %p47 = por %p45, %p46
    %s49 = sadd.s32 %s48, 1
    %p52 = scmp.eq.s32.totalorder %s14, 1
    %p53 = scmp.ne.s32.totalorder %s48, %s50
    %p54 = scmp.eq.s32.totalorder %s14, 0
    %p55 = por %p53, %p54
    %p56 = scmp.ne.s32.totalorder %s48, %s50
    %p57 = scmp.eq.s32.totalorder %s19, 1
    %p58 = por %p56, %p57
    %p59 = scmp.ne.s32.totalorder %s50, %s51
    %p60 = scmp.eq.s32.totalorder %s19, 0
    %p61 = por %p59, %p60
    %p62 = scmp.ne.s32.totalorder %s50, %s51
    %p63 = scmp.eq.s32.totalorder %s20, 1
    %p64 = por %p62, %p63
    %p66 = scmp.ne.s32.totalorder %s51, %s65
    %p67 = scmp.eq.s32.totalorder %s20, 0
    %p68 = por %p66, %p67
    %s70 = sadd.s32 %s69, 1
    %p73 = scmp.eq.s32.totalorder %s14, 1
    %p74 = scmp.ne.s32.totalorder %s69, %s71
    %p75 = scmp.eq.s32.totalorder %s14, 0
    %p76 = por %p74, %p75
    %p77 = scmp.ne.s32.totalorder %s69, %s71
    %p78 = scmp.eq.s32.totalorder %s19, 1
    %p79 = por %p77, %p78
    %p80 = scmp.ne.s32.totalorder %s71, %s72
    %p81 = scmp.eq.s32.totalorder %s19, 0
    %p82 = por %p80, %p81
    %p83 = scmp.ne.s32.totalorder %s71, %s72
    %p84 = scmp.eq.s32.totalorder %s20, 1
    %p85 = por %p83, %p84
    %p87 = scmp.ne.s32.totalorder %s72, %s86
    %p88 = scmp.eq.s32.totalorder %s20, 0
    %p89 = por %p87, %p88
    %s91 = sadd.s32 %s90, 1
    %p94 = scmp.eq.s32.totalorder %s14, 1
    %p95 = scmp.ne.s32.totalorder %s90, %s92
    %p96 = scmp.eq.s32.totalorder %s14, 0
    %p97 = por %p95, %p96
    %p98 = scmp.ne.s32.totalorder %s90, %s92
    %p99 = scmp.eq.s32.totalorder %s19, 1
    %p100 = por %p98, %p99
    %p101 = scmp.ne.s32.totalorder %s92, %s93
    %p102 = scmp.eq.s32.totalorder %s19, 0
    %p103 = por %p101, %p102
    %p104 = scmp.ne.s32.totalorder %s92, %s93
    %p105 = scmp.eq.s32.totalorder %s20, 1
    %p106 = por %p104, %p105
    %p108 = scmp.ne.s32.totalorder %s93, %s107
    %p109 = scmp.eq.s32.totalorder %s20, 0
    %p110 = por %p108, %p109
    %s112 = sadd.s32 %s111, 1
    %p115 = scmp.eq.s32.totalorder %s14, 1
    %p116 = scmp.ne.s32.totalorder %s111, %s113
    %p117 = scmp.eq.s32.totalorder %s14, 0
    %p118 = por %p116, %p117
    %p119 = scmp.ne.s32.totalorder %s111, %s113
    %p120 = scmp.eq.s32.totalorder %s19, 1
    %p121 = por %p119, %p120
    %p122 = scmp.ne.s32.totalorder %s113, %s114
    %p123 = scmp.eq.s32.totalorder %s19, 0
    %p124 = por %p122, %p123
    %p125 = scmp.ne.s32.totalorder %s113, %s114
    %p126 = scmp.eq.s32.totalorder %s20, 1
    %p127 = por %p125, %p126
    %p129 = scmp.ne.s32.totalorder %s114, %s128
    %p130 = scmp.eq.s32.totalorder %s20, 0
    %p131 = por %p129, %p130
    %s132 = ssub.s32 %s14, %s21
    %p133 = scmp.eq.s32.totalorder %s132, 0
    %s135 = sadd.s32 %s134, 1
    %s136 = scalar_select %p133, %s134, %s135
    %p139 = pneg %p133
    %p140 = scmp.eq.s32.totalorder %s14, 1
    %p141 = por %p139, %p140
    %p142 = scmp.ne.s32.totalorder %s134, %s137
    %p143 = scmp.eq.s32.totalorder %s14, 0
    %p144 = por %p142, %p143
    %p145 = scmp.ne.s32.totalorder %s134, %s137
    %p146 = scmp.eq.s32.totalorder %s19, 1
    %p147 = por %p145, %p146
    %p148 = scmp.ne.s32.totalorder %s137, %s138
    %p149 = scmp.eq.s32.totalorder %s19, 0
    %p150 = por %p148, %p149
    %p151 = scmp.ne.s32.totalorder %s137, %s138
    %p152 = scmp.eq.s32.totalorder %s20, 1
    %p153 = por %p151, %p152
    %p155 = scmp.ne.s32.totalorder %s138, %s154
    %p156 = scmp.eq.s32.totalorder %s20, 0
    %p157 = por %p155, %p156
    %s158 = ssub.s32 %s14, %s21
    %p159 = scmp.eq.s32.totalorder %s158, 0
    %s161 = sadd.s32 %s160, 1
    %s162 = scalar_select %p159, %s160, %s161
    %p165 = pneg %p159
    %p166 = scmp.eq.s32.totalorder %s14, 1
    %p167 = por %p165, %p166
    %p168 = scmp.ne.s32.totalorder %s160, %s163
    %p169 = scmp.eq.s32.totalorder %s14, 0
    %p170 = por %p168, %p169
    %p171 = scmp.ne.s32.totalorder %s160, %s163
    %p172 = scmp.eq.s32.totalorder %s19, 1
    %p173 = por %p171, %p172
    %p174 = scmp.ne.s32.totalorder %s163, %s164
    %p175 = scmp.eq.s32.totalorder %s19, 0
    %p176 = por %p174, %p175
    %p177 = scmp.ne.s32.totalorder %s163, %s164
    %p178 = scmp.eq.s32.totalorder %s20, 1
    %p179 = por %p177, %p178
    %p181 = scmp.ne.s32.totalorder %s164, %s180
    %p182 = scmp.eq.s32.totalorder %s20, 0
    %p183 = por %p181, %p182
    %s184 = ssub.s32 %s14, %s21
    %p185 = scmp.eq.s32.totalorder %s184, 0
    %s187 = sadd.s32 %s186, 1
    %s188 = scalar_select %p185, %s186, %s187
    %p191 = pneg %p185
    %p192 = scmp.eq.s32.totalorder %s14, 1
    %p193 = por %p191, %p192
    %p194 = scmp.ne.s32.totalorder %s186, %s189
    %p195 = scmp.eq.s32.totalorder %s14, 0
    %p196 = por %p194, %p195
    %p197 = scmp.ne.s32.totalorder %s186, %s189
    %p198 = scmp.eq.s32.totalorder %s19, 1
    %p199 = por %p197, %p198
    %p200 = scmp.ne.s32.totalorder %s189, %s190
    %p201 = scmp.eq.s32.totalorder %s19, 0
    %p202 = por %p200, %p201
    %p203 = scmp.ne.s32.totalorder %s189, %s190
    %p204 = scmp.eq.s32.totalorder %s20, 1
    %p205 = por %p203, %p204
    %p207 = scmp.ne.s32.totalorder %s190, %s206
    %p208 = scmp.eq.s32.totalorder %s20, 0
    %p209 = por %p207, %p208
    %p210 = scmp.le.s32.totalorder 1, %s14
    %p211 = scmp.lt.s32.totalorder %s14, 3
    %p212 = pnand %p210, %p211
    %p213 = pneg %p212
    // Predicated region
    $region9: #{decoder_block_forward.4} parent=5 // pred_check
      _
    $region10: #{decoder_block_forward.4} parent=5 // pred_check_branch
      %215 = sbr.rel (%p212) target = $region12
    $region11: #{decoder_block_forward.4} parent=5 // pred_region
      %s216 = ssub.s32 %s14, 1
      // Predicated region
      $region13: #{decoder_block_forward.4} parent=11 // pred_check
        %p217 = pneg %p61
      $region14: #{decoder_block_forward.4} parent=11 // pred_check_branch
        %219 = sbr.rel (%p217) target = $region16
      $region15: #{decoder_block_forward.4} parent=11 // pred_region
        _
      $region16: #{decoder_block_forward.4} parent=11 // pred_fallthru
        _
      // Predicated region
      $region17: #{decoder_block_forward.4} parent=11 // pred_check
        %p220 = pneg %p82
      $region18: #{decoder_block_forward.4} parent=11 // pred_check_branch
        %222 = sbr.rel (%p220) target = $region20
      $region19: #{decoder_block_forward.4} parent=11 // pred_region
        _
      $region20: #{decoder_block_forward.4} parent=11 // pred_fallthru
        _
      // Predicated region
      $region21: #{decoder_block_forward.4} parent=11 // pred_check
        %p223 = pneg %p103
      $region22: #{decoder_block_forward.4} parent=11 // pred_check_branch
        %225 = sbr.rel (%p223) target = $region24
      $region23: #{decoder_block_forward.4} parent=11 // pred_region
        _
      $region24: #{decoder_block_forward.4} parent=11 // pred_fallthru
        _
      // Predicated region
      $region25: #{decoder_block_forward.4} parent=11 // pred_check
        %p226 = pneg %p124
      $region26: #{decoder_block_forward.4} parent=11 // pred_check_branch
        %228 = sbr.rel (%p226) target = $region28
      $region27: #{decoder_block_forward.4} parent=11 // pred_region
        _
      $region28: #{decoder_block_forward.4} parent=11 // pred_fallthru
        _
    $region12: #{decoder_block_forward.4} parent=5 // pred_fallthru
      _
    %p229 = scmp.lt.s32.totalorder %s14, 2
    // Predicated region
    $region29: #{decoder_block_forward.4} parent=5 // pred_check
      %p230 = pneg %p229
    $region30: #{decoder_block_forward.4} parent=5 // pred_check_branch
      %232 = sbr.rel (%p230) target = $region32
    $region31: #{decoder_block_forward.4} parent=5 // pred_region
      // Predicated region
      $region33: #{decoder_block_forward.4} parent=31 // pred_check
        %p233 = pneg %p34
      $region34: #{decoder_block_forward.4} parent=31 // pred_check_branch
        %235 = sbr.rel (%p233) target = $region36
      $region35: #{decoder_block_forward.4} parent=31 // pred_region
        %p236 = scmp.lt.s32.totalorder %s14, 1
        %s237 = scalar_select %p236, %s14, 1
        %s238 = smul.addr %s237, 2
        %s239 = smul.addr %s238, 4
        %s240 = scalar_lea.vmem %s0, %s239
      $region36: #{decoder_block_forward.4} parent=31 // pred_fallthru
        _
    $region32: #{decoder_block_forward.4} parent=5 // pred_fallthru
      _
    %p241 = scmp.le.s32.totalorder 1, %s14
    %p242 = scmp.lt.s32.totalorder %s14, 3
    %p243 = pnand %p241, %p242
    %p244 = pneg %p243
    // Predicated region
    $region37: #{decoder_block_forward.4} parent=5 // pred_check
      _
    $region38: #{decoder_block_forward.4} parent=5 // pred_check_branch
      %246 = sbr.rel (%p243) target = $region40
    $region39: #{decoder_block_forward.4} parent=5 // pred_region
      %s247 = ssub.s32 %s14, 1
      %p248 = scmp.lt.s32.totalorder %s19, 1
      %s249 = scalar_select %p248, %s19, 1
      %s250 = smul.addr %s249, 2
      %s251 = smul.addr %s250, 4
      %s252 = scalar_lea.vmem %s0, %s251
      %p253 = pneg %p40
      %p254 = pneg %p37
      %p255 = pneg %p61
      %p256 = pneg %p58
      %p257 = pneg %p82
      %p258 = pneg %p79
      %p259 = pneg %p103
      %p260 = pneg %p100
      %p261 = pneg %p124
      %p262 = pneg %p121
      %p263 = pneg %p150
      %p264 = pneg %p147
      %p265 = scmp.lt.s32.totalorder %s19, 1
      %s266 = scalar_select %p265, %s19, 1
      %s267 = smul.addr %s266, 2
      %s268 = smul.addr %s267, 4
      %s269 = scalar_lea.vmem %s5, %s268
      %p270 = pneg %p176
      %p271 = pneg %p173
      %p272 = scmp.lt.s32.totalorder %s19, 1
      %s273 = scalar_select %p272, %s19, 1
      %s274 = smul.addr %s273, 4
      %s275 = scalar_lea.vmem %s6, %s274
      %p276 = pneg %p202
      %p277 = pneg %p199
      %p278 = scmp.lt.s32.totalorder %s19, 1
      %s279 = scalar_select %p278, %s19, 1
      %s280 = smul.addr %s279, 4
      %s281 = scalar_lea.vmem %s7, %s280
      %p282 = scmp.lt.s32.totalorder %s19, 1
      %s283 = scalar_select %p282, %s19, 1
      %s284 = smul.addr %s283, 2
      %s285 = smul.addr %s284, 4
      %s286 = scalar_lea.vmem %s0, %s285
      %p287 = scmp.lt.s32.totalorder %s19, 1
      %s288 = scalar_select %p287, %s19, 1
      %s289 = smul.addr %s288, 2
      %s290 = smul.addr %s289, 4
      %s291 = scalar_lea.vmem %s5, %s290
      %p292 = scmp.lt.s32.totalorder %s19, 1
      %s293 = scalar_select %p292, %s19, 1
      %s294 = smul.addr %s293, 4
      %s295 = scalar_lea.vmem %s6, %s294
      %p296 = scmp.lt.s32.totalorder %s19, 1
      %s297 = scalar_select %p296, %s19, 1
      %s298 = smul.addr %s297, 4
      %s299 = scalar_lea.vmem %s7, %s298
      %v300 = vld [vmem:[%s286] sm:$0xff]
      %v301 = vld [vmem:[%s1] sm:$0xf]
      %303 = vset.pattern.permute.xlu0 0
      %304 = vperm.xlu0 %303, %v301
      %v305 = vpop.permute.xlu0 %304
      %v307 = vunpack.c.l.s4 839922192
      %v308 = vunpack.c.0.s8 %v307
      %v309 = vlaneseq
      %v310 = vshrl.u32 %v309, 7
      %v311 = vsub.s32 %v308, %v310
      %v312 = vrot.slane %v305, %v311
      %v314 = vmul.f32 %v300, %v312
      %v315 = vld [vmem:[%s2] sm:$0xf]
      %317 = vset.pattern.permute.xlu0 0
      %318 = vperm.xlu0 %317, %v315
      %v319 = vpop.permute.xlu0 %318
      %v321 = vunpack.c.l.s4 839922192
      %v322 = vunpack.c.0.s8 %v321
      %v323 = vlaneseq
      %v324 = vshrl.u32 %v323, 7
      %v325 = vsub.s32 %v322, %v324
      %v326 = vrot.slane %v319, %v325
      %v328 = vadd.f32 %v314, %v326
      %v329 = vmax.f32 %v328, 0.0
      %v330 = vlaneseq
      %v331 = vand.u32 %v330, 127
      %v332 = vadd.s32 %v331, 128
      %v333 = vand.u32 %v331, 15
      %v334 = vand.u32 %v332, 15
      %vm335 = vcmp.ge.s32.totalorder %v331, 16
      %vm336 = vcmp.ge.s32.totalorder %v332, 16
      %vm337 = vcmp.lt.s32.totalorder %v331, 240
      %vm338 = vcmp.lt.s32.totalorder %v332, 240
      %vm339 = vcmp.ge.s32.totalorder %v333, 1
      %vm340 = vcmp.ge.s32.totalorder %v334, 1
      %vm341 = vcmp.lt.s32.totalorder %v333, 15
      %vm342 = vcmp.lt.s32.totalorder %v334, 15
      %v344 = vcombine.high %v329, %v329
      %346 = vrot.lane.b32.xlu0 %v329, 17
      %v347 = vpop.permute.xlu0 %346
      %348 = vrot.lane.b32.xlu0 %v344, 17
      %v349 = vpop.permute.xlu0 %348
      %vm350 = vcmp.lt.s32.totalorder %v331, 17
      %v351 = vsel %vm350, %v347, %v349
      %v352 = vsel %vm350, %v349, %v347
      %vm353 = vmand %vm335, %vm339
      %vm354 = vmand %vm336, %vm340
      %v355 = vsel %vm353, 1, 0
      %v356 = vsel %vm354, 1, 0
      %vm357 = vcmp.eq.s32.totalorder %v355, 1
      %vm358 = vcmp.eq.s32.totalorder %v356, 1
      %v359 = vsel %vm357, %v352, 0.0
      %v360 = vsel %vm358, %v351, 0.0
      %361 = vst [vmem:[#allocation2] sm:$0xf] %v359
      %362 = vst [vmem:[#allocation2 + $0x8] sm:$0xf] %v360
      %363 = vrot.lane.b32.xlu0 %v329, 16
      %v364 = vpop.permute.xlu0 %363
      %365 = vrot.lane.b32.xlu0 %v344, 16
      %v366 = vpop.permute.xlu0 %365
      %vm367 = vcmp.lt.s32.totalorder %v331, 16
      %v368 = vsel %vm367, %v364, %v366
      %v369 = vsel %vm367, %v366, %v364
      %v370 = vsel %vm335, 1, 0
      %v371 = vsel %vm336, 1, 0
      %vm372 = vcmp.eq.s32.totalorder %v370, 1
      %vm373 = vcmp.eq.s32.totalorder %v371, 1
      %v374 = vsel %vm372, %v369, 0.0
      %v375 = vsel %vm373, %v368, 0.0
      %v378 = vrot.slane %v374, 4
      %v379 = vrot.slane %v375, 4
      %382 = vst [vmem:[#allocation2] sm:$0xf0] %v378
      %383 = vst [vmem:[#allocation2 + $0x8] sm:$0xf0] %v379
      %384 = vrot.lane.b32.xlu0 %v329, 15
      %v385 = vpop.permute.xlu0 %384
      %386 = vrot.lane.b32.xlu0 %v344, 15
      %v387 = vpop.permute.xlu0 %386
      %vm388 = vcmp.lt.s32.totalorder %v331, 15
      %v389 = vsel %vm388, %v385, %v387
      %v390 = vsel %vm388, %v387, %v385
      %vm391 = vmand %vm335, %vm341
      %vm392 = vmand %vm336, %vm342
      %v393 = vsel %vm391, 1, 0
      %v394 = vsel %vm392, 1, 0
      %vm395 = vcmp.eq.s32.totalorder %v393, 1
      %vm396 = vcmp.eq.s32.totalorder %v394, 1
      %v397 = vsel %vm395, %v390, 0.0
      %v398 = vsel %vm396, %v389, 0.0
      %399 = vst [vmem:[#allocation2 + $0x10] sm:$0xf] %v397
      %400 = vst [vmem:[#allocation2 + $0x18] sm:$0xf] %v398
      %401 = vrot.lane.b32.xlu0 %v329, 1
      %v402 = vpop.permute.xlu0 %401
      %403 = vrot.lane.b32.xlu0 %v344, 1
      %v404 = vpop.permute.xlu0 %403
      %vm405 = vcmp.lt.s32.totalorder %v331, 1
      %v406 = vsel %vm405, %v402, %v404
      %v407 = vsel %vm405, %v404, %v402
      %v408 = vsel %vm339, 1, 0
      %v409 = vsel %vm340, 1, 0
      %vm410 = vcmp.eq.s32.totalorder %v408, 1
      %vm411 = vcmp.eq.s32.totalorder %v409, 1
      %v412 = vsel %vm410, %v407, 0.0
      %v413 = vsel %vm411, %v406, 0.0
      %v416 = vrot.slane %v412, 4
      %v417 = vrot.slane %v413, 4
      %420 = vst [vmem:[#allocation2 + $0x10] sm:$0xf0] %v416
      %421 = vst [vmem:[#allocation2 + $0x18] sm:$0xf0] %v417
      %422 = vst [vmem:[#allocation2 + $0x20] sm:$0xf] %v329
      %423 = vst [vmem:[#allocation2 + $0x28] sm:$0xf] %v344
      %424 = vrot.lane.b32.xlu0 %v329, 127
      %v425 = vpop.permute.xlu0 %424
      %426 = vrot.lane.b32.xlu0 %v344, 127
      %v427 = vpop.permute.xlu0 %426
      %vm428 = vcmp.lt.s32.totalorder %v331, 127
      %v429 = vsel %vm428, %v425, %v427
      %v430 = vsel %vm428, %v427, %v425
      %v431 = vsel %vm341, 1, 0
      %v432 = vsel %vm342, 1, 0
      %vm433 = vcmp.eq.s32.totalorder %v431, 1
      %vm434 = vcmp.eq.s32.totalorder %v432, 1
      %v435 = vsel %vm433, %v429, 0.0
      %v436 = vsel %vm434, %v430, 0.0
      %v439 = vrot.slane %v435, 4
      %v440 = vrot.slane %v436, 4
      %443 = vst [vmem:[#allocation2 + $0x20] sm:$0xf0] %v439
      %444 = vst [vmem:[#allocation2 + $0x28] sm:$0xf0] %v440
      %445 = vrot.lane.b32.xlu0 %v329, 113
      %v446 = vpop.permute.xlu0 %445
      %447 = vrot.lane.b32.xlu0 %v344, 113
      %v448 = vpop.permute.xlu0 %447
      %vm449 = vcmp.lt.s32.totalorder %v331, 113
      %v450 = vsel %vm449, %v446, %v448
      %v451 = vsel %vm449, %v448, %v446
      %vm452 = vmand %vm337, %vm339
      %vm453 = vmand %vm338, %vm340
      %v454 = vsel %vm452, 1, 0
      %v455 = vsel %vm453, 1, 0
      %vm456 = vcmp.eq.s32.totalorder %v454, 1
      %vm457 = vcmp.eq.s32.totalorder %v455, 1
      %v458 = vsel %vm456, %v450, 0.0
      %v459 = vsel %vm457, %v451, 0.0
      %460 = vst [vmem:[#allocation2 + $0x30] sm:$0xf] %v458
      %461 = vst [vmem:[#allocation2 + $0x38] sm:$0xf] %v459
      %462 = vrot.lane.b32.xlu0 %v329, 112
      %v463 = vpop.permute.xlu0 %462
      %464 = vrot.lane.b32.xlu0 %v344, 112
      %v465 = vpop.permute.xlu0 %464
      %vm466 = vcmp.lt.s32.totalorder %v331, 112
      %v467 = vsel %vm466, %v463, %v465
      %v468 = vsel %vm466, %v465, %v463
      %v469 = vsel %vm337, 1, 0
      %v470 = vsel %vm338, 1, 0
      %vm471 = vcmp.eq.s32.totalorder %v469, 1
      %vm472 = vcmp.eq.s32.totalorder %v470, 1
      %v473 = vsel %vm471, %v467, 0.0
      %v474 = vsel %vm472, %v468, 0.0
      %v477 = vrot.slane %v473, 4
      %v478 = vrot.slane %v474, 4
      %481 = vst [vmem:[#allocation2 + $0x30] sm:$0xf0] %v477
      %482 = vst [vmem:[#allocation2 + $0x38] sm:$0xf0] %v478
      %483 = vrot.lane.b32.xlu0 %v329, 111
      %v484 = vpop.permute.xlu0 %483
      %485 = vrot.lane.b32.xlu0 %v344, 111
      %v486 = vpop.permute.xlu0 %485
      %vm487 = vcmp.lt.s32.totalorder %v331, 111
      %v488 = vsel %vm487, %v484, %v486
      %v489 = vsel %vm487, %v486, %v484
      %vm490 = vmand %vm337, %vm341
      %vm491 = vmand %vm338, %vm342
      %v492 = vsel %vm490, 1, 0
      %v493 = vsel %vm491, 1, 0
      %vm494 = vcmp.eq.s32.totalorder %v492, 1
      %vm495 = vcmp.eq.s32.totalorder %v493, 1
      %v496 = vsel %vm494, %v488, 0.0
      %v497 = vsel %vm495, %v489, 0.0
      %498 = vst [vmem:[#allocation2 + $0x40] sm:$0xf] %v496
      %499 = vst [vmem:[#allocation2 + $0x48] sm:$0xf] %v497
      %v500 = vld [vmem:[%s3] sm:$0xf]
      %v501 = vld [vmem:[#allocation2] sm:$0xff]
      %v502 = vld [vmem:[#allocation2 + $0x8] sm:$0xff]
      %v503 = vld [vmem:[#allocation2 + $0x10] sm:$0xff]
      %v504 = vld [vmem:[#allocation2 + $0x18] sm:$0xff]
      %v505 = vld [vmem:[#allocation2 + $0x20] sm:$0xff]
      %v506 = vld [vmem:[#allocation2 + $0x28] sm:$0xff]
      %v507 = vld [vmem:[#allocation2 + $0x30] sm:$0xff]
      %v508 = vld [vmem:[#allocation2 + $0x38] sm:$0xff]
      %v509 = vld [vmem:[#allocation2 + $0x40] sm:$0xf]
      %v510 = vld [vmem:[#allocation2 + $0x48] sm:$0xf]
      %v511 = vld [vmem:[%s4] sm:$0xf]
      %513 = vset.pattern.permute.xlu0 0
      %514 = vperm.xlu0 %513, %v511
      %v515 = vpop.permute.xlu0 %514
      %vm517 = vcmask 293888
      %v519 = vsel %vm517, %v500, 0
      %vm521 = vcmask 1043456
      %v523 = vsel %vm521, %v509, 0
      %v526 = vsel %vm521, %v510, 0
      %528 = vmatprep.subr.mxu0 %v502
      %529 = vmatpush1.msra.mxu0 %v501
      %530 = vmatprep.subr.mxu0 %v504
      %531 = vmatpush1.msra.mxu0 %v503
      %532 = vmatprep.subr.mxu0 %v506
      %533 = vmatpush1.msra.mxu0 %v505
      %534 = vmatprep.subr.mxu0 %v508
      %535 = vmatpush1.msra.mxu0 %v507
      %536 = vmatprep.subr.mxu0 %v526
      %537 = vmatpush1.msra.mxu0 %v523
      %538 = vmatprep.subr.mxu0 0.0
      %539 = vmatpush1.msra.mxu0 0.0
      %540 = vmatprep.subr.mxu0 0.0
      %541 = vmatpush1.msra.mxu0 0.0
      %542 = vmatprep.subr.mxu0 0.0
      %543 = vmatpush1.msra.mxu0 0.0
      %544 = vmatprep.subr.mxu0 0.0
      %545 = vmatpush1.msra.mxu0 0.0
      %546 = vmatprep.subr.mxu0 0.0
      %547 = vmatpush1.msra.mxu0 0.0
      %548 = vmatprep.subr.mxu0 0.0
      %549 = vmatpush1.msra.mxu0 0.0
      %550 = vmatprep.subr.mxu0 0.0
      %551 = vmatpush1.msra.mxu0 0.0
      %552 = vmatprep.subr.mxu0 0.0
      %553 = vmatpush1.msra.mxu0 0.0
      %554 = vmatprep.subr.mxu0 0.0
      %555 = vmatpush1.msra.mxu0 0.0
      %556 = vmatprep.subr.mxu0 0.0
      %557 = vmatpush1.msra.mxu0 0.0
      %558 = vmatprep.subr.mxu0 0.0
      %559 = vmatpush1.msra.mxu0 0.0
      %560 = vmatprep.subr.mxu0 0.0
      %561 = vmatpush1.msra.mxu0 0.0
      %562 = vmatprep.subr.mxu0 0.0
      %563 = vmatpush1.msra.mxu0 0.0
      %564 = vmatprep.subr.mxu0 0.0
      %565 = vmatpush1.msra.mxu0 0.0
      %566 = vmatprep.subr.mxu0 0.0
      %567 = vmatpush1.msra.mxu0 0.0
      %568 = vmatprep.subr.mxu0 0.0
      %569 = vmatpush1.msra.mxu0 0.0
      %570 = vmatprep.subr.mxu0 0.0
      %571 = vmatpush1.msra.mxu0 0.0
      %572 = vmatprep.subr.mxu0 0.0
      %573 = vmatpush1.msra.mxu0 0.0
      %574 = vmatprep.subr.mxu0 0.0
      %575 = vmatpush1.msra.mxu0 0.0
      %576 = vmatprep.subr.mxu0 0.0
      %577 = vmatpush1.msra.mxu0 0.0
      %578 = vmatprep.subr.mxu0 0.0
      %579 = vmatpush1.msra.mxu0 0.0
      %580 = vmatprep.subr.mxu0 0.0
      %581 = vmatpush1.msra.mxu0 0.0
      %582 = vmatprep.subr.mxu0 0.0
      %583 = vmatpush1.msra.mxu0 0.0
      %584 = vmatprep.subr.mxu0 0.0
      %585 = vmatpush1.msra.mxu0 0.0
      %586 = vmatprep.subr.mxu0 0.0
      %587 = vmatpush1.msra.mxu0 0.0
      %588 = vmatprep.subr.mxu0 0.0
      %589 = vmatpush1.msra.mxu0 0.0
      %590 = vmatprep.subr.mxu0 0.0
      %591 = vmatpush1.msra.mxu0 0.0
      %592 = vmatprep.mubr.f32.mxu0 0.0
      %593 = vmatmul.mubr.f32.gmra.mrb[0].mxu0 %v519
      %v594 = vpop.f32.mrb[0].mxu0
      %v595 = vadd.f32 %v515, %v594
      %v596 = vpop.f32.mrb[0].mxu0
      %v597 = vadd.f32 %v515, %v596
      %598 = vdwg.mxu0
      %v601 = vcombine.low %v595, %v597
      %603 = vst [vmem:[%s291] sm:$0xff] %v601
      %v604 = vsel %vm521, %v595, 0.0
      %v605 = vsel %vm521, %v597, 0.0
      %v606 = vadd.f32 %v604, %v605
      %607 = vadd.xlane.f32.xlu0 %v606
      %v608 = vpop.xlane.xlu0 %607
      %vm609 = vcmask 3072
      %610 = vst.msk [vmem:[%s295] sm:$0xf] %vm609, %v608
      %v611 = vmul.f32 %v595, %v595
      %v612 = vmul.f32 %v597, %v597
      %v613 = vsel %vm521, %v611, 0.0
      %v614 = vsel %vm521, %v612, 0.0
      %v615 = vadd.f32 %v613, %v614
      %616 = vadd.xlane.f32.xlu0 %v615
      %v617 = vpop.xlane.xlu0 %616
      %618 = vst.msk [vmem:[%s299] sm:$0xf] %vm609, %v617
      %p619 = scmp.lt.s32.totalorder %s19, 1
      %s620 = scalar_select %p619, %s19, 1
      %s621 = smul.addr %s620, 2
      %s622 = smul.addr %s621, 4
      %s623 = scalar_lea.vmem %s5, %s622
      %p624 = scmp.lt.s32.totalorder %s19, 1
      %s625 = scalar_select %p624, %s19, 1
      %s626 = smul.addr %s625, 4
      %s627 = scalar_lea.vmem %s6, %s626
      %p628 = scmp.lt.s32.totalorder %s19, 1
      %s629 = scalar_select %p628, %s19, 1
      %s630 = smul.addr %s629, 4
      %s631 = scalar_lea.vmem %s7, %s630
      // Predicated region
      $region41: #{decoder_block_forward.4} parent=39 // pred_check
        %p632 = pneg %p147
      $region42: #{decoder_block_forward.4} parent=39 // pred_check_branch
        %634 = sbr.rel (%p632) target = $region44
      $region43: #{decoder_block_forward.4} parent=39 // pred_region
        _
      $region44: #{decoder_block_forward.4} parent=39 // pred_fallthru
        _
      // Predicated region
      $region45: #{decoder_block_forward.4} parent=39 // pred_check
        %p635 = pneg %p173
      $region46: #{decoder_block_forward.4} parent=39 // pred_check_branch
        %637 = sbr.rel (%p635) target = $region48
      $region47: #{decoder_block_forward.4} parent=39 // pred_region
        _
      $region48: #{decoder_block_forward.4} parent=39 // pred_fallthru
        _
      // Predicated region
      $region49: #{decoder_block_forward.4} parent=39 // pred_check
        %p638 = pneg %p199
      $region50: #{decoder_block_forward.4} parent=39 // pred_check_branch
        %640 = sbr.rel (%p638) target = $region52
      $region51: #{decoder_block_forward.4} parent=39 // pred_region
        _
      $region52: #{decoder_block_forward.4} parent=39 // pred_fallthru
        _
    $region40: #{decoder_block_forward.4} parent=5 // pred_fallthru
      _
    %p641 = scmp.le.s32.totalorder 2, %s14
    // Predicated region
    $region53: #{decoder_block_forward.4} parent=5 // pred_check
      %p642 = pneg %p641
    $region54: #{decoder_block_forward.4} parent=5 // pred_check_branch
      %644 = sbr.rel (%p642) target = $region56
    $region55: #{decoder_block_forward.4} parent=5 // pred_region
      %s645 = ssub.s32 %s14, 2
      // Predicated region
      $region57: #{decoder_block_forward.4} parent=55 // pred_check
        %p646 = pneg %p153
      $region58: #{decoder_block_forward.4} parent=55 // pred_check_branch
        %648 = sbr.rel (%p646) target = $region60
      $region59: #{decoder_block_forward.4} parent=55 // pred_region
        %p649 = scmp.lt.s32.totalorder %s20, 1
        %s650 = scalar_select %p649, %s20, 1
        %s651 = smul.addr %s650, 2
        %s652 = smul.addr %s651, 4
        %s653 = scalar_lea.vmem %s5, %s652
      $region60: #{decoder_block_forward.4} parent=55 // pred_fallthru
        _
      // Predicated region
      $region61: #{decoder_block_forward.4} parent=55 // pred_check
        %p654 = pneg %p179
      $region62: #{decoder_block_forward.4} parent=55 // pred_check_branch
        %656 = sbr.rel (%p654) target = $region64
      $region63: #{decoder_block_forward.4} parent=55 // pred_region
        %p657 = scmp.lt.s32.totalorder %s20, 1
        %s658 = scalar_select %p657, %s20, 1
        %s659 = smul.addr %s658, 4
        %s660 = scalar_lea.vmem %s6, %s659
      $region64: #{decoder_block_forward.4} parent=55 // pred_fallthru
        _
      // Predicated region
      $region65: #{decoder_block_forward.4} parent=55 // pred_check
        %p661 = pneg %p205
      $region66: #{decoder_block_forward.4} parent=55 // pred_check_branch
        %663 = sbr.rel (%p661) target = $region68
      $region67: #{decoder_block_forward.4} parent=55 // pred_region
        %p664 = scmp.lt.s32.totalorder %s20, 1
        %s665 = scalar_select %p664, %s20, 1
        %s666 = smul.addr %s665, 4
        %s667 = scalar_lea.vmem %s7, %s666
      $region68: #{decoder_block_forward.4} parent=55 // pred_fallthru
        _
    $region56: #{decoder_block_forward.4} parent=5 // pred_fallthru
      _
  $region6: #{decoder_block_forward.4} parent=0 // loop_footer
    %s18 = sadd.s32 1, %s14
  $region7: #{decoder_block_forward.4} parent=0 // loop_footer_branch
    %13 = sbr.rel target = $region3
  $region8: #{decoder_block_forward.4} parent=0 // loop_exit
    _

// kernel: decoder_block_forward.3
$region0: #{decoder_block_forward.3}
  #allocation0 [shape = 'u32[]', space=smem, size = 0x4, offset = 0x4, fixed_abs, tag = 'smem constant byte address 0x4 - core index']
  #allocation1 [shape = 'u32[144,128]{1,0:T(1,128)}', space=vmem, size = 0x12000, scoped, tag = 'internal scratch']
  #allocation2 [shape = 'f32[8,256]{1,0:T(8,128)}', space=vmem, size = 0x2000, scoped, tag = 'scratch operand']
  #allocation3 [shape = 'f32[72,256]{1,0:T(8,128)}', space=vmem, size = 0x12000, scoped, tag = 'scratch operand']
  %s0 = inlined_call_operand.vmem [shape: f32[2,8,256], index: 0, kind: input, shape index: {}]
  %s1 = inlined_call_operand.vmem [shape: f32[2,4,256], index: 1, kind: input, shape index: {}]
  %s2 = inlined_call_operand.vmem [shape: f32[4,4,8], index: 2, kind: input, shape index: {}]
  %s3 = inlined_call_operand.vmem [shape: f32[4,1], index: 3, kind: input, shape index: {}]
  %s4 = inlined_call_operand.vmem [shape: f32[4,72], index: 4, kind: input, shape index: {}]
  %s5 = inlined_call_operand.vmem [shape: f32[4,1], index: 5, kind: input, shape index: {}]
  %s6 = inlined_call_operand.vmem [shape: f32[2,4,256], index: 6, kind: output, shape index: {0}]
  %s7 = inlined_call_operand.vmem [shape: f32[2,4,1], index: 7, kind: output, shape index: {1}]
  %s8 = inlined_call_operand.vmem [shape: f32[2,4,1], index: 8, kind: output, shape index: {2}]
  %9 = xla_tuple %s6, %s7, %s8
  %s10 = sld [smem:[#allocation0]]
  $region73: #{decoder_block_forward.3} parent=0
    _
  %s12 = ssub.s32 1, %s10
  %s13 = scalar_select 0, %s12, %s10
  loop: start=0, step=1, limit=4
  $region2: #{decoder_block_forward.3} parent=0 // loop_pre_header
    _
  $region3: #{decoder_block_forward.3} parent=0 // loop_header
    %s15 = sphi 0, %s19
    %p16 = scmp.ge.s32.totalorder %s15, 4
    %s25 = sphi 0, %s27
    %s28 = sphi 0, %s25
    %s29 = sphi 0, %s28
    %s45 = sphi 0, %s29
    %s51 = sphi 0, %s53
    %s54 = sphi 0, %s51
    %s55 = sphi 0, %s54
    %s71 = sphi 0, %s55
    %s75 = sphi 0, %s75
    %s77 = sphi 0, %s75
    %s78 = sphi 0, %s77
    %s92 = sphi 0, %s78
    %s96 = sphi 0, %s96
    %s98 = sphi 0, %s96
    %s99 = sphi 0, %s98
    %s113 = sphi 0, %s99
    %s117 = sphi 0, %s117
    %s119 = sphi 0, %s117
    %s120 = sphi 0, %s119
    %s134 = sphi 0, %s120
    %s138 = sphi 0, %s138
    %s140 = sphi 0, %s138
    %s141 = sphi 0, %s140
    %s155 = sphi 0, %s141
    %s161 = sphi 0, %s163
    %s164 = sphi 0, %s161
    %s165 = sphi 0, %s164
    %s181 = sphi 0, %s165
    %s187 = sphi 0, %s189
    %s190 = sphi 0, %s187
    %s191 = sphi 0, %s190
    %s207 = sphi 0, %s191
    %s213 = sphi 0, %s215
    %s216 = sphi 0, %s213
    %s217 = sphi 0, %s216
    %s233 = sphi 0, %s217
  $region4: #{decoder_block_forward.3} parent=0 // loop_header_branch
    %18 = sbr.rel (%p16) target = $region8
  $region5: #{decoder_block_forward.3} parent=0 // loop_body
    %s20 = ssub.s32 %s15, 1
    %s21 = ssub.s32 %s15, 2
    %s22 = sadd.s32 %s15, 1
    %s23 = ssub.s32 %s15, %s22
    %p24 = scmp.eq.s32.totalorder %s23, 0
    %s26 = sadd.s32 %s25, 1
    %s27 = scalar_select %p24, %s25, %s26
    %p30 = pneg %p24
    %p31 = scmp.eq.s32.totalorder %s15, 1
    %p32 = por %p30, %p31
    %p33 = scmp.ne.s32.totalorder %s25, %s28
    %p34 = scmp.eq.s32.totalorder %s15, 0
    %p35 = por %p33, %p34
    %p36 = scmp.ne.s32.totalorder %s25, %s28
    %p37 = scmp.eq.s32.totalorder %s20, 1
    %p38 = por %p36, %p37
    %p39 = scmp.ne.s32.totalorder %s28, %s29
    %p40 = scmp.eq.s32.totalorder %s20, 0
    %p41 = por %p39, %p40
    %p42 = scmp.ne.s32.totalorder %s28, %s29
    %p43 = scmp.eq.s32.totalorder %s21, 1
    %p44 = por %p42, %p43
    %p46 = scmp.ne.s32.totalorder %s29, %s45
    %p47 = scmp.eq.s32.totalorder %s21, 0
    %p48 = por %p46, %p47
    %s49 = ssub.s32 %s15, %s22
    %p50 = scmp.eq.s32.totalorder %s49, 0
    %s52 = sadd.s32 %s51, 1
    %s53 = scalar_select %p50, %s51, %s52
    %p56 = pneg %p50
    %p57 = scmp.eq.s32.totalorder %s15, 1
    %p58 = por %p56, %p57
    %p59 = scmp.ne.s32.totalorder %s51, %s54
    %p60 = scmp.eq.s32.totalorder %s15, 0
    %p61 = por %p59, %p60
    %p62 = scmp.ne.s32.totalorder %s51, %s54
    %p63 = scmp.eq.s32.totalorder %s20, 1
    %p64 = por %p62, %p63
    %p65 = scmp.ne.s32.totalorder %s54, %s55
    %p66 = scmp.eq.s32.totalorder %s20, 0
    %p67 = por %p65, %p66
    %p68 = scmp.ne.s32.totalorder %s54, %s55
    %p69 = scmp.eq.s32.totalorder %s21, 1
    %p70 = por %p68, %p69
    %p72 = scmp.ne.s32.totalorder %s55, %s71
    %p73 = scmp.eq.s32.totalorder %s21, 0
    %p74 = por %p72, %p73
    %s76 = sadd.s32 %s75, 1
    %p79 = scmp.eq.s32.totalorder %s15, 1
    %p80 = scmp.ne.s32.totalorder %s75, %s77
    %p81 = scmp.eq.s32.totalorder %s15, 0
    %p82 = por %p80, %p81
    %p83 = scmp.ne.s32.totalorder %s75, %s77
    %p84 = scmp.eq.s32.totalorder %s20, 1
    %p85 = por %p83, %p84
    %p86 = scmp.ne.s32.totalorder %s77, %s78
    %p87 = scmp.eq.s32.totalorder %s20, 0
    %p88 = por %p86, %p87
    %p89 = scmp.ne.s32.totalorder %s77, %s78
    %p90 = scmp.eq.s32.totalorder %s21, 1
    %p91 = por %p89, %p90
    %p93 = scmp.ne.s32.totalorder %s78, %s92
    %p94 = scmp.eq.s32.totalorder %s21, 0
    %p95 = por %p93, %p94
    %s97 = sadd.s32 %s96, 1
    %p100 = scmp.eq.s32.totalorder %s15, 1
    %p101 = scmp.ne.s32.totalorder %s96, %s98
    %p102 = scmp.eq.s32.totalorder %s15, 0
    %p103 = por %p101, %p102
    %p104 = scmp.ne.s32.totalorder %s96, %s98
    %p105 = scmp.eq.s32.totalorder %s20, 1
    %p106 = por %p104, %p105
    %p107 = scmp.ne.s32.totalorder %s98, %s99
    %p108 = scmp.eq.s32.totalorder %s20, 0
    %p109 = por %p107, %p108
    %p110 = scmp.ne.s32.totalorder %s98, %s99
    %p111 = scmp.eq.s32.totalorder %s21, 1
    %p112 = por %p110, %p111
    %p114 = scmp.ne.s32.totalorder %s99, %s113
    %p115 = scmp.eq.s32.totalorder %s21, 0
    %p116 = por %p114, %p115
    %s118 = sadd.s32 %s117, 1
    %p121 = scmp.eq.s32.totalorder %s15, 1
    %p122 = scmp.ne.s32.totalorder %s117, %s119
    %p123 = scmp.eq.s32.totalorder %s15, 0
    %p124 = por %p122, %p123
    %p125 = scmp.ne.s32.totalorder %s117, %s119
    %p126 = scmp.eq.s32.totalorder %s20, 1
    %p127 = por %p125, %p126
    %p128 = scmp.ne.s32.totalorder %s119, %s120
    %p129 = scmp.eq.s32.totalorder %s20, 0
    %p130 = por %p128, %p129
    %p131 = scmp.ne.s32.totalorder %s119, %s120
    %p132 = scmp.eq.s32.totalorder %s21, 1
    %p133 = por %p131, %p132
    %p135 = scmp.ne.s32.totalorder %s120, %s134
    %p136 = scmp.eq.s32.totalorder %s21, 0
    %p137 = por %p135, %p136
    %s139 = sadd.s32 %s138, 1
    %p142 = scmp.eq.s32.totalorder %s15, 1
    %p143 = scmp.ne.s32.totalorder %s138, %s140
    %p144 = scmp.eq.s32.totalorder %s15, 0
    %p145 = por %p143, %p144
    %p146 = scmp.ne.s32.totalorder %s138, %s140
    %p147 = scmp.eq.s32.totalorder %s20, 1
    %p148 = por %p146, %p147
    %p149 = scmp.ne.s32.totalorder %s140, %s141
    %p150 = scmp.eq.s32.totalorder %s20, 0
    %p151 = por %p149, %p150
    %p152 = scmp.ne.s32.totalorder %s140, %s141
    %p153 = scmp.eq.s32.totalorder %s21, 1
    %p154 = por %p152, %p153
    %p156 = scmp.ne.s32.totalorder %s141, %s155
    %p157 = scmp.eq.s32.totalorder %s21, 0
    %p158 = por %p156, %p157
    %s159 = ssub.s32 %s15, %s22
    %p160 = scmp.eq.s32.totalorder %s159, 0
    %s162 = sadd.s32 %s161, 1
    %s163 = scalar_select %p160, %s161, %s162
    %p166 = pneg %p160
    %p167 = scmp.eq.s32.totalorder %s15, 1
    %p168 = por %p166, %p167
    %p169 = scmp.ne.s32.totalorder %s161, %s164
    %p170 = scmp.eq.s32.totalorder %s15, 0
    %p171 = por %p169, %p170
    %p172 = scmp.ne.s32.totalorder %s161, %s164
    %p173 = scmp.eq.s32.totalorder %s20, 1
    %p174 = por %p172, %p173
    %p175 = scmp.ne.s32.totalorder %s164, %s165
    %p176 = scmp.eq.s32.totalorder %s20, 0
    %p177 = por %p175, %p176
    %p178 = scmp.ne.s32.totalorder %s164, %s165
    %p179 = scmp.eq.s32.totalorder %s21, 1
    %p180 = por %p178, %p179
    %p182 = scmp.ne.s32.totalorder %s165, %s181
    %p183 = scmp.eq.s32.totalorder %s21, 0
    %p184 = por %p182, %p183
    %s185 = ssub.s32 %s15, %s22
    %p186 = scmp.eq.s32.totalorder %s185, 0
    %s188 = sadd.s32 %s187, 1
    %s189 = scalar_select %p186, %s187, %s188
    %p192 = pneg %p186
    %p193 = scmp.eq.s32.totalorder %s15, 1
    %p194 = por %p192, %p193
    %p195 = scmp.ne.s32.totalorder %s187, %s190
    %p196 = scmp.eq.s32.totalorder %s15, 0
    %p197 = por %p195, %p196
    %p198 = scmp.ne.s32.totalorder %s187, %s190
    %p199 = scmp.eq.s32.totalorder %s20, 1
    %p200 = por %p198, %p199
    %p201 = scmp.ne.s32.totalorder %s190, %s191
    %p202 = scmp.eq.s32.totalorder %s20, 0
    %p203 = por %p201, %p202
    %p204 = scmp.ne.s32.totalorder %s190, %s191
    %p205 = scmp.eq.s32.totalorder %s21, 1
    %p206 = por %p204, %p205
    %p208 = scmp.ne.s32.totalorder %s191, %s207
    %p209 = scmp.eq.s32.totalorder %s21, 0
    %p210 = por %p208, %p209
    %s211 = ssub.s32 %s15, %s22
    %p212 = scmp.eq.s32.totalorder %s211, 0
    %s214 = sadd.s32 %s213, 1
    %s215 = scalar_select %p212, %s213, %s214
    %p218 = pneg %p212
    %p219 = scmp.eq.s32.totalorder %s15, 1
    %p220 = por %p218, %p219
    %p221 = scmp.ne.s32.totalorder %s213, %s216
    %p222 = scmp.eq.s32.totalorder %s15, 0
    %p223 = por %p221, %p222
    %p224 = scmp.ne.s32.totalorder %s213, %s216
    %p225 = scmp.eq.s32.totalorder %s20, 1
    %p226 = por %p224, %p225
    %p227 = scmp.ne.s32.totalorder %s216, %s217
    %p228 = scmp.eq.s32.totalorder %s20, 0
    %p229 = por %p227, %p228
    %p230 = scmp.ne.s32.totalorder %s216, %s217
    %p231 = scmp.eq.s32.totalorder %s21, 1
    %p232 = por %p230, %p231
    %p234 = scmp.ne.s32.totalorder %s217, %s233
    %p235 = scmp.eq.s32.totalorder %s21, 0
    %p236 = por %p234, %p235
    %p237 = scmp.le.s32.totalorder 1, %s15
    %p238 = scmp.lt.s32.totalorder %s15, 3
    %p239 = pnand %p237, %p238
    %p240 = pneg %p239
    // Predicated region
    $region9: #{decoder_block_forward.3} parent=5 // pred_check
      _
    $region10: #{decoder_block_forward.3} parent=5 // pred_check_branch
      %242 = sbr.rel (%p239) target = $region12
    $region11: #{decoder_block_forward.3} parent=5 // pred_region
      %s243 = ssub.s32 %s15, 1
      // Predicated region
      $region13: #{decoder_block_forward.3} parent=11 // pred_check
        %p244 = pneg %p88
      $region14: #{decoder_block_forward.3} parent=11 // pred_check_branch
        %246 = sbr.rel (%p244) target = $region16
      $region15: #{decoder_block_forward.3} parent=11 // pred_region
        _
      $region16: #{decoder_block_forward.3} parent=11 // pred_fallthru
        _
      // Predicated region
      $region17: #{decoder_block_forward.3} parent=11 // pred_check
        %p247 = pneg %p109
      $region18: #{decoder_block_forward.3} parent=11 // pred_check_branch
        %249 = sbr.rel (%p247) target = $region20
      $region19: #{decoder_block_forward.3} parent=11 // pred_region
        _
      $region20: #{decoder_block_forward.3} parent=11 // pred_fallthru
        _
      // Predicated region
      $region21: #{decoder_block_forward.3} parent=11 // pred_check
        %p250 = pneg %p130
      $region22: #{decoder_block_forward.3} parent=11 // pred_check_branch
        %252 = sbr.rel (%p250) target = $region24
      $region23: #{decoder_block_forward.3} parent=11 // pred_region
        _
      $region24: #{decoder_block_forward.3} parent=11 // pred_fallthru
        _
      // Predicated region
      $region25: #{decoder_block_forward.3} parent=11 // pred_check
        %p253 = pneg %p151
      $region26: #{decoder_block_forward.3} parent=11 // pred_check_branch
        %255 = sbr.rel (%p253) target = $region28
      $region27: #{decoder_block_forward.3} parent=11 // pred_region
        _
      $region28: #{decoder_block_forward.3} parent=11 // pred_fallthru
        _
    $region12: #{decoder_block_forward.3} parent=5 // pred_fallthru
      _
    %p256 = scmp.lt.s32.totalorder %s15, 2
    // Predicated region
    $region29: #{decoder_block_forward.3} parent=5 // pred_check
      %p257 = pneg %p256
    $region30: #{decoder_block_forward.3} parent=5 // pred_check_branch
      %259 = sbr.rel (%p257) target = $region32
    $region31: #{decoder_block_forward.3} parent=5 // pred_region
      // Predicated region
      $region33: #{decoder_block_forward.3} parent=31 // pred_check
        %p260 = pneg %p35
      $region34: #{decoder_block_forward.3} parent=31 // pred_check_branch
        %262 = sbr.rel (%p260) target = $region36
      $region35: #{decoder_block_forward.3} parent=31 // pred_region
        %p263 = scmp.lt.s32.totalorder %s15, 1
        %s264 = scalar_select %p263, %s15, 1
        %s265 = smul.addr %s264, 2
        %s266 = smul.addr %s265, 8
        %s267 = scalar_lea.vmem %s0, %s266
      $region36: #{decoder_block_forward.3} parent=31 // pred_fallthru
        _
      // Predicated region
      $region37: #{decoder_block_forward.3} parent=31 // pred_check
        %p268 = pneg %p61
      $region38: #{decoder_block_forward.3} parent=31 // pred_check_branch
        %270 = sbr.rel (%p268) target = $region40
      $region39: #{decoder_block_forward.3} parent=31 // pred_region
        %p271 = scmp.lt.s32.totalorder %s15, 1
        %s272 = scalar_select %p271, %s15, 1
        %s273 = smul.addr %s272, 2
        %s274 = smul.addr %s273, 4
        %s275 = scalar_lea.vmem %s1, %s274
      $region40: #{decoder_block_forward.3} parent=31 // pred_fallthru
        _
    $region32: #{decoder_block_forward.3} parent=5 // pred_fallthru
      _
    %p276 = scmp.le.s32.totalorder 1, %s15
    %p277 = scmp.lt.s32.totalorder %s15, 3
    %p278 = pnand %p276, %p277
    %p279 = pneg %p278
    // Predicated region
    $region41: #{decoder_block_forward.3} parent=5 // pred_check
      _
    $region42: #{decoder_block_forward.3} parent=5 // pred_check_branch
      %281 = sbr.rel (%p278) target = $region44
    $region43: #{decoder_block_forward.3} parent=5 // pred_region
      %s282 = ssub.s32 %s15, 1
      %p283 = scmp.lt.s32.totalorder %s20, 1
      %s284 = scalar_select %p283, %s20, 1
      %s285 = smul.addr %s284, 2
      %s286 = smul.addr %s285, 8
      %s287 = scalar_lea.vmem %s0, %s286
      %p288 = pneg %p41
      %p289 = pneg %p38
      %p290 = scmp.lt.s32.totalorder %s20, 1
      %s291 = scalar_select %p290, %s20, 1
      %s292 = smul.addr %s291, 2
      %s293 = smul.addr %s292, 4
      %s294 = scalar_lea.vmem %s1, %s293
      %p295 = pneg %p67
      %p296 = pneg %p64
      %p297 = pneg %p88
      %p298 = pneg %p85
      %p299 = pneg %p109
      %p300 = pneg %p106
      %p301 = pneg %p130
      %p302 = pneg %p127
      %p303 = pneg %p151
      %p304 = pneg %p148
      %p305 = pneg %p177
      %p306 = pneg %p174
      %p307 = scmp.lt.s32.totalorder %s20, 1
      %s308 = scalar_select %p307, %s20, 1
      %s309 = smul.addr %s308, 2
      %s310 = smul.addr %s309, 4
      %s311 = scalar_lea.vmem %s6, %s310
      %p312 = pneg %p203
      %p313 = pneg %p200
      %p314 = scmp.lt.s32.totalorder %s20, 1
      %s315 = scalar_select %p314, %s20, 1
      %s316 = smul.addr %s315, 4
      %s317 = scalar_lea.vmem %s7, %s316
      %p318 = pneg %p229
      %p319 = pneg %p226
      %p320 = scmp.lt.s32.totalorder %s20, 1
      %s321 = scalar_select %p320, %s20, 1
      %s322 = smul.addr %s321, 4
      %s323 = scalar_lea.vmem %s8, %s322
      %p324 = scmp.lt.s32.totalorder %s20, 1
      %s325 = scalar_select %p324, %s20, 1
      %s326 = smul.addr %s325, 2
      %s327 = smul.addr %s326, 8
      %s328 = scalar_lea.vmem %s0, %s327
      %p329 = scmp.lt.s32.totalorder %s20, 1
      %s330 = scalar_select %p329, %s20, 1
      %s331 = smul.addr %s330, 2
      %s332 = smul.addr %s331, 4
      %s333 = scalar_lea.vmem %s1, %s332
      %p334 = scmp.lt.s32.totalorder %s20, 1
      %s335 = scalar_select %p334, %s20, 1
      %s336 = smul.addr %s335, 2
      %s337 = smul.addr %s336, 4
      %s338 = scalar_lea.vmem %s6, %s337
      %p339 = scmp.lt.s32.totalorder %s20, 1
      %s340 = scalar_select %p339, %s20, 1
      %s341 = smul.addr %s340, 4
      %s342 = scalar_lea.vmem %s7, %s341
      %p343 = scmp.lt.s32.totalorder %s20, 1
      %s344 = scalar_select %p343, %s20, 1
      %s345 = smul.addr %s344, 4
      %s346 = scalar_lea.vmem %s8, %s345
      %v347 = vlaneseq
      %v348 = vand.u32 %v347, 127
      %v349 = vadd.s32 %v348, 128
      %v350 = vshra.s32 %v348, 4
      %v351 = vshra.s32 %v349, 4
      %v352 = vand.u32 %v350, 1
      %v353 = vand.u32 %v351, 1
      %v354 = vand.u32 %v348, 1
      %v355 = vand.u32 %v349, 1
      %v356 = vld [vmem:[%s328] sm:$0xff]
      %v357 = vld [vmem:[%s328 + $0x8] sm:$0xff]
      %vm358 = vcmp.eq.s32.totalorder %v352, 0
      %vm359 = vcmp.eq.s32.totalorder %v353, 0
      %vm360 = vcmp.eq.s32.totalorder %v354, 0
      %vm361 = vcmp.eq.s32.totalorder %v355, 0
      %vm362 = vmand %vm358, %vm360
      %vm363 = vmand %vm359, %vm361
      %v364 = vld [vmem:[%s2] sm:$0xf]
      %vm365 = vcmask 64512
      %v367 = vsel %vm365, %v364, 0
      %369 = vmatprep.subr.mxu0 %v357
      %370 = vmatpush1.msra.mxu0 %v356
      %371 = vmatprep.subr.mxu0 0.0
      %372 = vmatpush1.msra.mxu0 0.0
      %373 = vmatprep.subr.mxu0 0.0
      %374 = vmatpush1.msra.mxu0 0.0
      %375 = vmatprep.subr.mxu0 0.0
      %376 = vmatpush1.msra.mxu0 0.0
      %377 = vmatprep.subr.mxu0 0.0
      %378 = vmatpush1.msra.mxu0 0.0
      %379 = vmatprep.subr.mxu0 0.0
      %380 = vmatpush1.msra.mxu0 0.0
      %381 = vmatprep.subr.mxu0 0.0
      %382 = vmatpush1.msra.mxu0 0.0
      %383 = vmatprep.subr.mxu0 0.0
      %384 = vmatpush1.msra.mxu0 0.0
      %385 = vmatprep.subr.mxu0 0.0
      %386 = vmatpush1.msra.mxu0 0.0
      %387 = vmatprep.subr.mxu0 0.0
      %388 = vmatpush1.msra.mxu0 0.0
      %389 = vmatprep.subr.mxu0 0.0
      %390 = vmatpush1.msra.mxu0 0.0
      %391 = vmatprep.subr.mxu0 0.0
      %392 = vmatpush1.msra.mxu0 0.0
      %393 = vmatprep.subr.mxu0 0.0
      %394 = vmatpush1.msra.mxu0 0.0
      %395 = vmatprep.subr.mxu0 0.0
      %396 = vmatpush1.msra.mxu0 0.0
      %397 = vmatprep.subr.mxu0 0.0
      %398 = vmatpush1.msra.mxu0 0.0
      %399 = vmatprep.subr.mxu0 0.0
      %400 = vmatpush1.msra.mxu0 0.0
      %401 = vmatprep.subr.mxu0 0.0
      %402 = vmatpush1.msra.mxu0 0.0
      %403 = vmatprep.subr.mxu0 0.0
      %404 = vmatpush1.msra.mxu0 0.0
      %405 = vmatprep.subr.mxu0 0.0
      %406 = vmatpush1.msra.mxu0 0.0
      %407 = vmatprep.subr.mxu0 0.0
      %408 = vmatpush1.msra.mxu0 0.0
      %409 = vmatprep.subr.mxu0 0.0
      %410 = vmatpush1.msra.mxu0 0.0
      %411 = vmatprep.subr.mxu0 0.0
      %412 = vmatpush1.msra.mxu0 0.0
      %413 = vmatprep.subr.mxu0 0.0
      %414 = vmatpush1.msra.mxu0 0.0
      %415 = vmatprep.subr.mxu0 0.0
      %416 = vmatpush1.msra.mxu0 0.0
      %417 = vmatprep.subr.mxu0 0.0
      %418 = vmatpush1.msra.mxu0 0.0
      %419 = vmatprep.subr.mxu0 0.0
      %420 = vmatpush1.msra.mxu0 0.0
      %421 = vmatprep.subr.mxu0 0.0
      %422 = vmatpush1.msra.mxu0 0.0
      %423 = vmatprep.subr.mxu0 0.0
      %424 = vmatpush1.msra.mxu0 0.0
      %425 = vmatprep.subr.mxu0 0.0
      %426 = vmatpush1.msra.mxu0 0.0
      %427 = vmatprep.subr.mxu0 0.0
      %428 = vmatpush1.msra.mxu0 0.0
      %429 = vmatprep.subr.mxu0 0.0
      %430 = vmatpush1.msra.mxu0 0.0
      %431 = vmatprep.subr.mxu0 0.0
      %432 = vmatpush1.msra.mxu0 0.0
      %433 = vmatprep.mubr.f32.mxu0 0.0
      %434 = vmatmul.mubr.f32.gmra.mrb[0].mxu0 %v367
      %v435 = vpop.f32.mrb[0].mxu0
      %v436 = vadd.f32 0.0, %v435
      %v437 = vpop.f32.mrb[0].mxu0
      %v438 = vadd.f32 0.0, %v437
      %439 = vdwg.mxu0
      %v440 = vsel %vm362, 1, 0
      %v441 = vsel %vm363, 1, 0
      %vm442 = vcmp.eq.s32.totalorder %v440, 1
      %vm443 = vcmp.eq.s32.totalorder %v441, 1
      %v444 = vsel %vm442, %v436, 0.0
      %v445 = vsel %vm443, %v438, 0.0
      %v446 = vadd.f32 %v444, 0.0
      %v447 = vadd.f32 %v445, 0.0
      %vm448 = vcmp.eq.s32.totalorder %v354, 1
      %vm449 = vcmp.eq.s32.totalorder %v355, 1
      %vm450 = vmand %vm358, %vm448
      %vm451 = vmand %vm359, %vm449
      %s452 = scalar_lea.vmem %s2, 4
      %v453 = vld [vmem:[%s452] sm:$0xf]
      %v455 = vsel %vm365, %v453, 0
      %457 = vmatprep.subr.mxu0 %v357
      %458 = vmatpush1.msra.mxu0 %v356
      %459 = vmatprep.subr.mxu0 0.0
      %460 = vmatpush1.msra.mxu0 0.0
      %461 = vmatprep.subr.mxu0 0.0
      %462 = vmatpush1.msra.mxu0 0.0
      %463 = vmatprep.subr.mxu0 0.0
      %464 = vmatpush1.msra.mxu0 0.0
      %465 = vmatprep.subr.mxu0 0.0
      %466 = vmatpush1.msra.mxu0 0.0
      %467 = vmatprep.subr.mxu0 0.0
      %468 = vmatpush1.msra.mxu0 0.0
      %469 = vmatprep.subr.mxu0 0.0
      %470 = vmatpush1.msra.mxu0 0.0
      %471 = vmatprep.subr.mxu0 0.0
      %472 = vmatpush1.msra.mxu0 0.0
      %473 = vmatprep.subr.mxu0 0.0
      %474 = vmatpush1.msra.mxu0 0.0
      %475 = vmatprep.subr.mxu0 0.0
      %476 = vmatpush1.msra.mxu0 0.0
      %477 = vmatprep.subr.mxu0 0.0
      %478 = vmatpush1.msra.mxu0 0.0
      %479 = vmatprep.subr.mxu0 0.0
      %480 = vmatpush1.msra.mxu0 0.0
      %481 = vmatprep.subr.mxu0 0.0
      %482 = vmatpush1.msra.mxu0 0.0
      %483 = vmatprep.subr.mxu0 0.0
      %484 = vmatpush1.msra.mxu0 0.0
      %485 = vmatprep.subr.mxu0 0.0
      %486 = vmatpush1.msra.mxu0 0.0
      %487 = vmatprep.subr.mxu0 0.0
      %488 = vmatpush1.msra.mxu0 0.0
      %489 = vmatprep.subr.mxu0 0.0
      %490 = vmatpush1.msra.mxu0 0.0
      %491 = vmatprep.subr.mxu0 0.0
      %492 = vmatpush1.msra.mxu0 0.0
      %493 = vmatprep.subr.mxu0 0.0
      %494 = vmatpush1.msra.mxu0 0.0
      %495 = vmatprep.subr.mxu0 0.0
      %496 = vmatpush1.msra.mxu0 0.0
      %497 = vmatprep.subr.mxu0 0.0
      %498 = vmatpush1.msra.mxu0 0.0
      %499 = vmatprep.subr.mxu0 0.0
      %500 = vmatpush1.msra.mxu0 0.0
      %501 = vmatprep.subr.mxu0 0.0
      %502 = vmatpush1.msra.mxu0 0.0
      %503 = vmatprep.subr.mxu0 0.0
      %504 = vmatpush1.msra.mxu0 0.0
      %505 = vmatprep.subr.mxu0 0.0
      %506 = vmatpush1.msra.mxu0 0.0
      %507 = vmatprep.subr.mxu0 0.0
      %508 = vmatpush1.msra.mxu0 0.0
      %509 = vmatprep.subr.mxu0 0.0
      %510 = vmatpush1.msra.mxu0 0.0
      %511 = vmatprep.subr.mxu0 0.0
      %512 = vmatpush1.msra.mxu0 0.0
      %513 = vmatprep.subr.mxu0 0.0
      %514 = vmatpush1.msra.mxu0 0.0
      %515 = vmatprep.subr.mxu0 0.0
      %516 = vmatpush1.msra.mxu0 0.0
      %517 = vmatprep.subr.mxu0 0.0
      %518 = vmatpush1.msra.mxu0 0.0
      %519 = vmatprep.subr.mxu0 0.0
      %520 = vmatpush1.msra.mxu0 0.0
      %521 = vmatprep.mubr.f32.mxu0 0.0
      %522 = vmatmul.mubr.f32.gmra.mrb[0].mxu0 %v455
      %v523 = vpop.f32.mrb[0].mxu0
      %v524 = vadd.f32 0.0, %v523
      %v525 = vpop.f32.mrb[0].mxu0
      %v526 = vadd.f32 0.0, %v525
      %527 = vdwg.mxu0
      %v528 = vsel %vm450, 1, 0
      %v529 = vsel %vm451, 1, 0
      %vm530 = vcmp.eq.s32.totalorder %v528, 1
      %vm531 = vcmp.eq.s32.totalorder %v529, 1
      %v532 = vsel %vm530, %v524, 0.0
      %v533 = vsel %vm531, %v526, 0.0
      %v534 = vadd.f32 %v446, %v532
      %v535 = vadd.f32 %v447, %v533
      %vm536 = vcmp.eq.s32.totalorder %v352, 1
      %vm537 = vcmp.eq.s32.totalorder %v353, 1
      %vm538 = vmand %vm536, %vm360
      %vm539 = vmand %vm537, %vm361
      %s540 = scalar_lea.vmem %s2, 8
      %v541 = vld [vmem:[%s540] sm:$0xf]
      %v543 = vsel %vm365, %v541, 0
      %545 = vmatprep.subr.mxu0 %v357
      %546 = vmatpush1.msra.mxu0 %v356
      %547 = vmatprep.subr.mxu0 0.0
      %548 = vmatpush1.msra.mxu0 0.0
      %549 = vmatprep.subr.mxu0 0.0
      %550 = vmatpush1.msra.mxu0 0.0
      %551 = vmatprep.subr.mxu0 0.0
      %552 = vmatpush1.msra.mxu0 0.0
      %553 = vmatprep.subr.mxu0 0.0
      %554 = vmatpush1.msra.mxu0 0.0
      %555 = vmatprep.subr.mxu0 0.0
      %556 = vmatpush1.msra.mxu0 0.0
      %557 = vmatprep.subr.mxu0 0.0
      %558 = vmatpush1.msra.mxu0 0.0
      %559 = vmatprep.subr.mxu0 0.0
      %560 = vmatpush1.msra.mxu0 0.0
      %561 = vmatprep.subr.mxu0 0.0
      %562 = vmatpush1.msra.mxu0 0.0
      %563 = vmatprep.subr.mxu0 0.0
      %564 = vmatpush1.msra.mxu0 0.0
      %565 = vmatprep.subr.mxu0 0.0
      %566 = vmatpush1.msra.mxu0 0.0
      %567 = vmatprep.subr.mxu0 0.0
      %568 = vmatpush1.msra.mxu0 0.0
      %569 = vmatprep.subr.mxu0 0.0
      %570 = vmatpush1.msra.mxu0 0.0
      %571 = vmatprep.subr.mxu0 0.0
      %572 = vmatpush1.msra.mxu0 0.0
      %573 = vmatprep.subr.mxu0 0.0
      %574 = vmatpush1.msra.mxu0 0.0
      %575 = vmatprep.subr.mxu0 0.0
      %576 = vmatpush1.msra.mxu0 0.0
      %577 = vmatprep.subr.mxu0 0.0
      %578 = vmatpush1.msra.mxu0 0.0
      %579 = vmatprep.subr.mxu0 0.0
      %580 = vmatpush1.msra.mxu0 0.0
      %581 = vmatprep.subr.mxu0 0.0
      %582 = vmatpush1.msra.mxu0 0.0
      %583 = vmatprep.subr.mxu0 0.0
      %584 = vmatpush1.msra.mxu0 0.0
      %585 = vmatprep.subr.mxu0 0.0
      %586 = vmatpush1.msra.mxu0 0.0
      %587 = vmatprep.subr.mxu0 0.0
      %588 = vmatpush1.msra.mxu0 0.0
      %589 = vmatprep.subr.mxu0 0.0
      %590 = vmatpush1.msra.mxu0 0.0
      %591 = vmatprep.subr.mxu0 0.0
      %592 = vmatpush1.msra.mxu0 0.0
      %593 = vmatprep.subr.mxu0 0.0
      %594 = vmatpush1.msra.mxu0 0.0
      %595 = vmatprep.subr.mxu0 0.0
      %596 = vmatpush1.msra.mxu0 0.0
      %597 = vmatprep.subr.mxu0 0.0
      %598 = vmatpush1.msra.mxu0 0.0
      %599 = vmatprep.subr.mxu0 0.0
      %600 = vmatpush1.msra.mxu0 0.0
      %601 = vmatprep.subr.mxu0 0.0
      %602 = vmatpush1.msra.mxu0 0.0
      %603 = vmatprep.subr.mxu0 0.0
      %604 = vmatpush1.msra.mxu0 0.0
      %605 = vmatprep.subr.mxu0 0.0
      %606 = vmatpush1.msra.mxu0 0.0
      %607 = vmatprep.subr.mxu0 0.0
      %608 = vmatpush1.msra.mxu0 0.0
      %609 = vmatprep.mubr.f32.mxu0 0.0
      %610 = vmatmul.mubr.f32.gmra.mrb[0].mxu0 %v543
      %v611 = vpop.f32.mrb[0].mxu0
      %v612 = vadd.f32 0.0, %v611
      %v613 = vpop.f32.mrb[0].mxu0
      %v614 = vadd.f32 0.0, %v613
      %615 = vdwg.mxu0
      %v616 = vsel %vm538, 1, 0
      %v617 = vsel %vm539, 1, 0
      %vm618 = vcmp.eq.s32.totalorder %v616, 1
      %vm619 = vcmp.eq.s32.totalorder %v617, 1
      %v620 = vsel %vm618, %v612, 0.0
      %v621 = vsel %vm619, %v614, 0.0
      %v622 = vadd.f32 %v534, %v620
      %v623 = vadd.f32 %v535, %v621
      %vm624 = vmand %vm536, %vm448
      %vm625 = vmand %vm537, %vm449
      %s626 = scalar_lea.vmem %s2, 12
      %v627 = vld [vmem:[%s626] sm:$0xf]
      %v629 = vsel %vm365, %v627, 0
      %631 = vmatprep.subr.mxu0 %v357
      %632 = vmatpush1.msra.mxu0 %v356
      %633 = vmatprep.subr.mxu0 0.0
      %634 = vmatpush1.msra.mxu0 0.0
      %635 = vmatprep.subr.mxu0 0.0
      %636 = vmatpush1.msra.mxu0 0.0
      %637 = vmatprep.subr.mxu0 0.0
      %638 = vmatpush1.msra.mxu0 0.0
      %639 = vmatprep.subr.mxu0 0.0
      %640 = vmatpush1.msra.mxu0 0.0
      %641 = vmatprep.subr.mxu0 0.0
      %642 = vmatpush1.msra.mxu0 0.0
      %643 = vmatprep.subr.mxu0 0.0
      %644 = vmatpush1.msra.mxu0 0.0
      %645 = vmatprep.subr.mxu0 0.0
      %646 = vmatpush1.msra.mxu0 0.0
      %647 = vmatprep.subr.mxu0 0.0
      %648 = vmatpush1.msra.mxu0 0.0
      %649 = vmatprep.subr.mxu0 0.0
      %650 = vmatpush1.msra.mxu0 0.0
      %651 = vmatprep.subr.mxu0 0.0
      %652 = vmatpush1.msra.mxu0 0.0
      %653 = vmatprep.subr.mxu0 0.0
      %654 = vmatpush1.msra.mxu0 0.0
      %655 = vmatprep.subr.mxu0 0.0
      %656 = vmatpush1.msra.mxu0 0.0
      %657 = vmatprep.subr.mxu0 0.0
      %658 = vmatpush1.msra.mxu0 0.0
      %659 = vmatprep.subr.mxu0 0.0
      %660 = vmatpush1.msra.mxu0 0.0
      %661 = vmatprep.subr.mxu0 0.0
      %662 = vmatpush1.msra.mxu0 0.0
      %663 = vmatprep.subr.mxu0 0.0
      %664 = vmatpush1.msra.mxu0 0.0
      %665 = vmatprep.subr.mxu0 0.0
      %666 = vmatpush1.msra.mxu0 0.0
      %667 = vmatprep.subr.mxu0 0.0
      %668 = vmatpush1.msra.mxu0 0.0
      %669 = vmatprep.subr.mxu0 0.0
      %670 = vmatpush1.msra.mxu0 0.0
      %671 = vmatprep.subr.mxu0 0.0
      %672 = vmatpush1.msra.mxu0 0.0
      %673 = vmatprep.subr.mxu0 0.0
      %674 = vmatpush1.msra.mxu0 0.0
      %675 = vmatprep.subr.mxu0 0.0
      %676 = vmatpush1.msra.mxu0 0.0
      %677 = vmatprep.subr.mxu0 0.0
      %678 = vmatpush1.msra.mxu0 0.0
      %679 = vmatprep.subr.mxu0 0.0
      %680 = vmatpush1.msra.mxu0 0.0
      %681 = vmatprep.subr.mxu0 0.0
      %682 = vmatpush1.msra.mxu0 0.0
      %683 = vmatprep.subr.mxu0 0.0
      %684 = vmatpush1.msra.mxu0 0.0
      %685 = vmatprep.subr.mxu0 0.0
      %686 = vmatpush1.msra.mxu0 0.0
      %687 = vmatprep.subr.mxu0 0.0
      %688 = vmatpush1.msra.mxu0 0.0
      %689 = vmatprep.subr.mxu0 0.0
      %690 = vmatpush1.msra.mxu0 0.0
      %691 = vmatprep.subr.mxu0 0.0
      %692 = vmatpush1.msra.mxu0 0.0
      %693 = vmatprep.subr.mxu0 0.0
      %694 = vmatpush1.msra.mxu0 0.0
      %695 = vmatprep.mubr.f32.mxu0 0.0
      %696 = vmatmul.mubr.f32.gmra.mrb[0].mxu0 %v629
      %v697 = vpop.f32.mrb[0].mxu0
      %v698 = vadd.f32 0.0, %v697
      %v699 = vpop.f32.mrb[0].mxu0
      %v700 = vadd.f32 0.0, %v699
      %701 = vdwg.mxu0
      %v702 = vsel %vm624, 1, 0
      %v703 = vsel %vm625, 1, 0
      %vm704 = vcmp.eq.s32.totalorder %v702, 1
      %vm705 = vcmp.eq.s32.totalorder %v703, 1
      %v706 = vsel %vm704, %v698, 0.0
      %v707 = vsel %vm705, %v700, 0.0
      %v708 = vadd.f32 %v622, %v706
      %v709 = vadd.f32 %v623, %v707
      %v710 = vld [vmem:[%s3] sm:$0xf]
      %712 = vset.pattern.permute.xlu0 0
      %713 = vperm.xlu0 %712, %v710
      %v714 = vpop.permute.xlu0 %713
      %v716 = vadd.f32 %v708, %v714
      %v717 = vadd.f32 %v709, %v714
      %718 = vst [vmem:[#allocation2] sm:$0xf] %v716
      %719 = vst [vmem:[#allocation2 + $0x8] sm:$0xf] %v717
      %v720 = vld [vmem:[%s333] sm:$0xff]
      %v722 = vcombine.low %v720, %v720
      %724 = vst [vmem:[#allocation2] sm:$0xf0] %v722
      %725 = vst [vmem:[#allocation2 + $0x8] sm:$0xf0] %v720
      %v726 = vld [vmem:[#allocation2] sm:$0xff]
      %v727 = vld [vmem:[#allocation2 + $0x8] sm:$0xff]
      %v728 = vand.u32 %v348, 15
      %v729 = vand.u32 %v349, 15
      %vm730 = vcmp.ge.s32.totalorder %v348, 16
      %vm731 = vcmp.ge.s32.totalorder %v349, 16
      %vm732 = vcmp.lt.s32.totalorder %v348, 240
      %vm733 = vcmp.lt.s32.totalorder %v349, 240
      %vm734 = vcmp.ge.s32.totalorder %v728, 1
      %vm735 = vcmp.ge.s32.totalorder %v729, 1
      %vm736 = vcmp.lt.s32.totalorder %v728, 15
      %vm737 = vcmp.lt.s32.totalorder %v729, 15
      %738 = vrot.lane.b32.xlu0 %v726, 17
      %v739 = vpop.permute.xlu0 %738
      %740 = vrot.lane.b32.xlu0 %v727, 17
      %v741 = vpop.permute.xlu0 %740
      %vm742 = vcmp.lt.s32.totalorder %v348, 17
      %v743 = vsel %vm742, %v739, %v741
      %v744 = vsel %vm742, %v741, %v739
      %vm745 = vmand %vm730, %vm734
      %vm746 = vmand %vm731, %vm735
      %v747 = vsel %vm745, 1, 0
      %v748 = vsel %vm746, 1, 0
      %vm749 = vcmp.eq.s32.totalorder %v747, 1
      %vm750 = vcmp.eq.s32.totalorder %v748, 1
      %v751 = vsel %vm749, %v744, 0.0
      %v752 = vsel %vm750, %v743, 0.0
      %753 = vst [vmem:[#allocation3] sm:$0xff] %v751
      %754 = vst [vmem:[#allocation3 + $0x8] sm:$0xff] %v752
      %755 = vrot.lane.b32.xlu0 %v726, 16
      %v756 = vpop.permute.xlu0 %755
      %757 = vrot.lane.b32.xlu0 %v727, 16
      %v758 = vpop.permute.xlu0 %757
      %vm759 = vcmp.lt.s32.totalorder %v348, 16
      %v760 = vsel %vm759, %v756, %v758
      %v761 = vsel %vm759, %v758, %v756
      %v762 = vsel %vm730, 1, 0
      %v763 = vsel %vm731, 1, 0
      %vm764 = vcmp.eq.s32.totalorder %v762, 1
      %vm765 = vcmp.eq.s32.totalorder %v763, 1
      %v766 = vsel %vm764, %v761, 0.0
      %v767 = vsel %vm765, %v760, 0.0
      %768 = vst [vmem:[#allocation3 + $0x10] sm:$0xff] %v766
      %769 = vst [vmem:[#allocation3 + $0x18] sm:$0xff] %v767
      %770 = vrot.lane.b32.xlu0 %v726, 15
      %v771 = vpop.permute.xlu0 %770
      %772 = vrot.lane.b32.xlu0 %v727, 15
      %v773 = vpop.permute.xlu0 %772
      %vm774 = vcmp.lt.s32.totalorder %v348, 15
      %v775 = vsel %vm774, %v771, %v773
      %v776 = vsel %vm774, %v773, %v771
      %vm777 = vmand %vm730, %vm736
      %vm778 = vmand %vm731, %vm737
      %v779 = vsel %vm777, 1, 0
      %v780 = vsel %vm778, 1, 0
      %vm781 = vcmp.eq.s32.totalorder %v779, 1
      %vm782 = vcmp.eq.s32.totalorder %v780, 1
      %v783 = vsel %vm781, %v776, 0.0
      %v784 = vsel %vm782, %v775, 0.0
      %785 = vst [vmem:[#allocation3 + $0x20] sm:$0xff] %v783
      %786 = vst [vmem:[#allocation3 + $0x28] sm:$0xff] %v784
      %787 = vrot.lane.b32.xlu0 %v726, 1
      %v788 = vpop.permute.xlu0 %787
      %789 = vrot.lane.b32.xlu0 %v727, 1
      %v790 = vpop.permute.xlu0 %789
      %vm791 = vcmp.lt.s32.totalorder %v348, 1
      %v792 = vsel %vm791, %v788, %v790
      %v793 = vsel %vm791, %v790, %v788
      %v794 = vsel %vm734, 1, 0
      %v795 = vsel %vm735, 1, 0
      %vm796 = vcmp.eq.s32.totalorder %v794, 1
      %vm797 = vcmp.eq.s32.totalorder %v795, 1
      %v798 = vsel %vm796, %v793, 0.0
      %v799 = vsel %vm797, %v792, 0.0
      %800 = vst [vmem:[#allocation3 + $0x30] sm:$0xff] %v798
      %801 = vst [vmem:[#allocation3 + $0x38] sm:$0xff] %v799
      %802 = vst [vmem:[#allocation3 + $0x40] sm:$0xff] %v726
      %803 = vst [vmem:[#allocation3 + $0x48] sm:$0xff] %v727
      %804 = vrot.lane.b32.xlu0 %v726, 127
      %v805 = vpop.permute.xlu0 %804
      %806 = vrot.lane.b32.xlu0 %v727, 127
      %v807 = vpop.permute.xlu0 %806
      %vm808 = vcmp.lt.s32.totalorder %v348, 127
      %v809 = vsel %vm808, %v805, %v807
      %v810 = vsel %vm808, %v807, %v805
      %v811 = vsel %vm736, 1, 0
      %v812 = vsel %vm737, 1, 0
      %vm813 = vcmp.eq.s32.totalorder %v811, 1
      %vm814 = vcmp.eq.s32.totalorder %v812, 1
      %v815 = vsel %vm813, %v809, 0.0
      %v816 = vsel %vm814, %v810, 0.0
      %817 = vst [vmem:[#allocation3 + $0x50] sm:$0xff] %v815
      %818 = vst [vmem:[#allocation3 + $0x58] sm:$0xff] %v816
      %819 = vrot.lane.b32.xlu0 %v726, 113
      %v820 = vpop.permute.xlu0 %819
      %821 = vrot.lane.b32.xlu0 %v727, 113
      %v822 = vpop.permute.xlu0 %821
      %vm823 = vcmp.lt.s32.totalorder %v348, 113
      %v824 = vsel %vm823, %v820, %v822
      %v825 = vsel %vm823, %v822, %v820
      %vm826 = vmand %vm732, %vm734
      %vm827 = vmand %vm733, %vm735
      %v828 = vsel %vm826, 1, 0
      %v829 = vsel %vm827, 1, 0
      %vm830 = vcmp.eq.s32.totalorder %v828, 1
      %vm831 = vcmp.eq.s32.totalorder %v829, 1
      %v832 = vsel %vm830, %v824, 0.0
      %v833 = vsel %vm831, %v825, 0.0
      %834 = vst [vmem:[#allocation3 + $0x60] sm:$0xff] %v832
      %835 = vst [vmem:[#allocation3 + $0x68] sm:$0xff] %v833
      %836 = vrot.lane.b32.xlu0 %v726, 112
      %v837 = vpop.permute.xlu0 %836
      %838 = vrot.lane.b32.xlu0 %v727, 112
      %v839 = vpop.permute.xlu0 %838
      %vm840 = vcmp.lt.s32.totalorder %v348, 112
      %v841 = vsel %vm840, %v837, %v839
      %v842 = vsel %vm840, %v839, %v837
      %v843 = vsel %vm732, 1, 0
      %v844 = vsel %vm733, 1, 0
      %vm845 = vcmp.eq.s32.totalorder %v843, 1
      %vm846 = vcmp.eq.s32.totalorder %v844, 1
      %v847 = vsel %vm845, %v841, 0.0
      %v848 = vsel %vm846, %v842, 0.0
      %849 = vst [vmem:[#allocation3 + $0x70] sm:$0xff] %v847
      %850 = vst [vmem:[#allocation3 + $0x78] sm:$0xff] %v848
      %851 = vrot.lane.b32.xlu0 %v726, 111
      %v852 = vpop.permute.xlu0 %851
      %853 = vrot.lane.b32.xlu0 %v727, 111
      %v854 = vpop.permute.xlu0 %853
      %vm855 = vcmp.lt.s32.totalorder %v348, 111
      %v856 = vsel %vm855, %v852, %v854
      %v857 = vsel %vm855, %v854, %v852
      %vm858 = vmand %vm732, %vm736
      %vm859 = vmand %vm733, %vm737
      %v860 = vsel %vm858, 1, 0
      %v861 = vsel %vm859, 1, 0
      %vm862 = vcmp.eq.s32.totalorder %v860, 1
      %vm863 = vcmp.eq.s32.totalorder %v861, 1
      %v864 = vsel %vm862, %v856, 0.0
      %v865 = vsel %vm863, %v857, 0.0
      %866 = vst [vmem:[#allocation3 + $0x80] sm:$0xff] %v864
      %867 = vst [vmem:[#allocation3 + $0x88] sm:$0xff] %v865
      %v868 = vld [vmem:[%s4] sm:$0xf]
      %v869 = vld [vmem:[#allocation3] sm:$0xff]
      %v870 = vld [vmem:[#allocation3 + $0x8] sm:$0xff]
      %v871 = vld [vmem:[#allocation3 + $0x10] sm:$0xff]
      %v872 = vld [vmem:[#allocation3 + $0x18] sm:$0xff]
      %v873 = vld [vmem:[#allocation3 + $0x20] sm:$0xff]
      %v874 = vld [vmem:[#allocation3 + $0x28] sm:$0xff]
      %v875 = vld [vmem:[#allocation3 + $0x30] sm:$0xff]
      %v876 = vld [vmem:[#allocation3 + $0x38] sm:$0xff]
      %v877 = vld [vmem:[#allocation3 + $0x40] sm:$0xff]
      %v878 = vld [vmem:[#allocation3 + $0x48] sm:$0xff]
      %v879 = vld [vmem:[#allocation3 + $0x50] sm:$0xff]
      %v880 = vld [vmem:[#allocation3 + $0x58] sm:$0xff]
      %v881 = vld [vmem:[#allocation3 + $0x60] sm:$0xff]
      %v882 = vld [vmem:[#allocation3 + $0x68] sm:$0xff]
      %v883 = vld [vmem:[#allocation3 + $0x70] sm:$0xff]
      %v884 = vld [vmem:[#allocation3 + $0x78] sm:$0xff]
      %v885 = vld [vmem:[#allocation3 + $0x80] sm:$0xff]
      %v886 = vld [vmem:[#allocation3 + $0x88] sm:$0xff]
      %v887 = vld [vmem:[%s5] sm:$0xf]
      %889 = vset.pattern.permute.xlu0 0
      %890 = vperm.xlu0 %889, %v887
      %v891 = vpop.permute.xlu0 %890
      %vm893 = vcmask 588800
      %v895 = vsel %vm893, %v868, 0
      %897 = vmatprep.subr.mxu0 %v870
      %898 = vmatpush1.msra.mxu0 %v869
      %899 = vmatprep.subr.mxu0 %v872
      %900 = vmatpush1.msra.mxu0 %v871
      %901 = vmatprep.subr.mxu0 %v874
      %902 = vmatpush1.msra.mxu0 %v873
      %903 = vmatprep.subr.mxu0 %v876
      %904 = vmatpush1.msra.mxu0 %v875
      %905 = vmatprep.subr.mxu0 %v878
      %906 = vmatpush1.msra.mxu0 %v877
      %907 = vmatprep.subr.mxu0 %v880
      %908 = vmatpush1.msra.mxu0 %v879
      %909 = vmatprep.subr.mxu0 %v882
      %910 = vmatpush1.msra.mxu0 %v881
      %911 = vmatprep.subr.mxu0 %v884
      %912 = vmatpush1.msra.mxu0 %v883
      %913 = vmatprep.subr.mxu0 %v886
      %914 = vmatpush1.msra.mxu0 %v885
      %915 = vmatprep.subr.mxu0 0.0
      %916 = vmatpush1.msra.mxu0 0.0
      %917 = vmatprep.subr.mxu0 0.0
      %918 = vmatpush1.msra.mxu0 0.0
      %919 = vmatprep.subr.mxu0 0.0
      %920 = vmatpush1.msra.mxu0 0.0
      %921 = vmatprep.subr.mxu0 0.0
      %922 = vmatpush1.msra.mxu0 0.0
      %923 = vmatprep.subr.mxu0 0.0
      %924 = vmatpush1.msra.mxu0 0.0
      %925 = vmatprep.subr.mxu0 0.0
      %926 = vmatpush1.msra.mxu0 0.0
      %927 = vmatprep.subr.mxu0 0.0
      %928 = vmatpush1.msra.mxu0 0.0
      %929 = vmatprep.subr.mxu0 0.0
      %930 = vmatpush1.msra.mxu0 0.0
      %931 = vmatprep.subr.mxu0 0.0
      %932 = vmatpush1.msra.mxu0 0.0
      %933 = vmatprep.subr.mxu0 0.0
      %934 = vmatpush1.msra.mxu0 0.0
      %935 = vmatprep.subr.mxu0 0.0
      %936 = vmatpush1.msra.mxu0 0.0
      %937 = vmatprep.subr.mxu0 0.0
      %938 = vmatpush1.msra.mxu0 0.0
      %939 = vmatprep.subr.mxu0 0.0
      %940 = vmatpush1.msra.mxu0 0.0
      %941 = vmatprep.subr.mxu0 0.0
      %942 = vmatpush1.msra.mxu0 0.0
      %943 = vmatprep.subr.mxu0 0.0
      %944 = vmatpush1.msra.mxu0 0.0
      %945 = vmatprep.subr.mxu0 0.0
      %946 = vmatpush1.msra.mxu0 0.0
      %947 = vmatprep.subr.mxu0 0.0
      %948 = vmatpush1.msra.mxu0 0.0
      %949 = vmatprep.subr.mxu0 0.0
      %950 = vmatpush1.msra.mxu0 0.0
      %951 = vmatprep.subr.mxu0 0.0
      %952 = vmatpush1.msra.mxu0 0.0
      %953 = vmatprep.subr.mxu0 0.0
      %954 = vmatpush1.msra.mxu0 0.0
      %955 = vmatprep.subr.mxu0 0.0
      %956 = vmatpush1.msra.mxu0 0.0
      %957 = vmatprep.subr.mxu0 0.0
      %958 = vmatpush1.msra.mxu0 0.0
      %959 = vmatprep.subr.mxu0 0.0
      %960 = vmatpush1.msra.mxu0 0.0
      %961 = vmatprep.mubr.f32.mxu0 0.0
      %962 = vmatmul.mubr.f32.gmra.mrb[0].mxu0 %v895
      %v963 = vpop.f32.mrb[0].mxu0
      %v964 = vadd.f32 %v891, %v963
      %v965 = vpop.f32.mrb[0].mxu0
      %v966 = vadd.f32 %v891, %v965
      %967 = vdwg.mxu0
      %v970 = vcombine.low %v964, %v966
      %972 = vst [vmem:[%s338] sm:$0xff] %v970
      %vm973 = vcmask 1043456
      %v974 = vsel %vm973, %v964, 0.0
      %v975 = vsel %vm973, %v966, 0.0
      %v976 = vadd.f32 %v974, %v975
      %977 = vadd.xlane.f32.xlu0 %v976
      %v978 = vpop.xlane.xlu0 %977
      %vm979 = vcmask 3072
      %980 = vst.msk [vmem:[%s342] sm:$0xf] %vm979, %v978
      %v981 = vmul.f32 %v964, %v964
      %v982 = vmul.f32 %v966, %v966
      %v983 = vsel %vm973, %v981, 0.0
      %v984 = vsel %vm973, %v982, 0.0
      %v985 = vadd.f32 %v983, %v984
      %986 = vadd.xlane.f32.xlu0 %v985
      %v987 = vpop.xlane.xlu0 %986
      %988 = vst.msk [vmem:[%s346] sm:$0xf] %vm979, %v987
      %p989 = scmp.lt.s32.totalorder %s20, 1
      %s990 = scalar_select %p989, %s20, 1
      %s991 = smul.addr %s990, 2
      %s992 = smul.addr %s991, 4
      %s993 = scalar_lea.vmem %s6, %s992
      %p994 = scmp.lt.s32.totalorder %s20, 1
      %s995 = scalar_select %p994, %s20, 1
      %s996 = smul.addr %s995, 4
      %s997 = scalar_lea.vmem %s7, %s996
      %p998 = scmp.lt.s32.totalorder %s20, 1
      %s999 = scalar_select %p998, %s20, 1
      %s1000 = smul.addr %s999, 4
      %s1001 = scalar_lea.vmem %s8, %s1000
      // Predicated region
      $region45: #{decoder_block_forward.3} parent=43 // pred_check
        %p1002 = pneg %p174
      $region46: #{decoder_block_forward.3} parent=43 // pred_check_branch
        %1004 = sbr.rel (%p1002) target = $region48
      $region47: #{decoder_block_forward.3} parent=43 // pred_region
        _
      $region48: #{decoder_block_forward.3} parent=43 // pred_fallthru
        _
      // Predicated region
      $region49: #{decoder_block_forward.3} parent=43 // pred_check
        %p1005 = pneg %p200
      $region50: #{decoder_block_forward.3} parent=43 // pred_check_branch
        %1007 = sbr.rel (%p1005) target = $region52
      $region51: #{decoder_block_forward.3} parent=43 // pred_region
        _
      $region52: #{decoder_block_forward.3} parent=43 // pred_fallthru
        _
      // Predicated region
      $region53: #{decoder_block_forward.3} parent=43 // pred_check
        %p1008 = pneg %p226
      $region54: #{decoder_block_forward.3} parent=43 // pred_check_branch
        %1010 = sbr.rel (%p1008) target = $region56
      $region55: #{decoder_block_forward.3} parent=43 // pred_region
        _
      $region56: #{decoder_block_forward.3} parent=43 // pred_fallthru
        _
    $region44: #{decoder_block_forward.3} parent=5 // pred_fallthru
      _
    %p1011 = scmp.le.s32.totalorder 2, %s15
    // Predicated region
    $region57: #{decoder_block_forward.3} parent=5 // pred_check
      %p1012 = pneg %p1011
    $region58: #{decoder_block_forward.3} parent=5 // pred_check_branch
      %1014 = sbr.rel (%p1012) target = $region60
    $region59: #{decoder_block_forward.3} parent=5 // pred_region
      %s1015 = ssub.s32 %s15, 2
      // Predicated region
      $region61: #{decoder_block_forward.3} parent=59 // pred_check
        %p1016 = pneg %p180
      $region62: #{decoder_block_forward.3} parent=59 // pred_check_branch
        %1018 = sbr.rel (%p1016) target = $region64
      $region63: #{decoder_block_forward.3} parent=59 // pred_region
        %p1019 = scmp.lt.s32.totalorder %s21, 1
        %s1020 = scalar_select %p1019, %s21, 1
        %s1021 = smul.addr %s1020, 2
        %s1022 = smul.addr %s1021, 4
        %s1023 = scalar_lea.vmem %s6, %s1022
      $region64: #{decoder_block_forward.3} parent=59 // pred_fallthru
        _
      // Predicated region
      $region65: #{decoder_block_forward.3} parent=59 // pred_check
        %p1024 = pneg %p206
      $region66: #{decoder_block_forward.3} parent=59 // pred_check_branch
        %1026 = sbr.rel (%p1024) target = $region68
      $region67: #{decoder_block_forward.3} parent=59 // pred_region
        %p1027 = scmp.lt.s32.totalorder %s21, 1
        %s1028 = scalar_select %p1027, %s21, 1
        %s1029 = smul.addr %s1028, 4
        %s1030 = scalar_lea.vmem %s7, %s1029
      $region68: #{decoder_block_forward.3} parent=59 // pred_fallthru
        _
      // Predicated region
      $region69: #{decoder_block_forward.3} parent=59 // pred_check
        %p1031 = pneg %p232
      $region70: #{decoder_block_forward.3} parent=59 // pred_check_branch
        %1033 = sbr.rel (%p1031) target = $region72
      $region71: #{decoder_block_forward.3} parent=59 // pred_region
        %p1034 = scmp.lt.s32.totalorder %s21, 1
        %s1035 = scalar_select %p1034, %s21, 1
        %s1036 = smul.addr %s1035, 4
        %s1037 = scalar_lea.vmem %s8, %s1036
      $region72: #{decoder_block_forward.3} parent=59 // pred_fallthru
        _
    $region60: #{decoder_block_forward.3} parent=5 // pred_fallthru
      _
  $region6: #{decoder_block_forward.3} parent=0 // loop_footer
    %s19 = sadd.s32 1, %s15
  $region7: #{decoder_block_forward.3} parent=0 // loop_footer_branch
    %14 = sbr.rel target = $region3
  $region8: #{decoder_block_forward.3} parent=0 // loop_exit
    _

</llo_original>
